<compile_context>
chip_gen: v7x
topology: tpu7x:2x2x1
jax: 0.10.0
libtpu: 0.0.40
codegen_flags: <defaults>
</compile_context>

<pallas_src>
import functools
import numpy as np
import jax
import jax.numpy as jnp
from jax import lax
from jax.experimental import pallas as pl
from jax.experimental.pallas import tpu as pltpu

LN_EPS = 1e-5
_VMEM_LIMIT = 48 * 1024 * 1024          # explicit scoped-VMEM budget (fits v5e/v6e/v7x)


# ------------------------------------ tile-size helpers ---------------------------------------
def _largest_divisor_leq(n, cap):
    cap = max(1, min(n, cap))
    best = 1
    for d in range(1, cap + 1):
        if n % d == 0:
            best = d
    return best


def _pick_row_tile(n, c):
    """Row tile for kernel 1: divisor of n, multiple of 8 (or == n), VMEM-bounded."""
    cap = max(8, (4 * 1024 * 1024) // max(1, n * c * 4))
    best = None
    for d in range(1, n + 1):
        if n % d == 0 and d <= cap and (d % 8 == 0 or d == n):
            best = d
    return best if best is not None else n


def _pick_ti(n):
    """Row tile for kernel 2: keep the [TI, N, N] f32 logits intermediate ~<= 1 MiB."""
    cap = max(1, (256 * 1024) // max(1, n * n))
    return _largest_divisor_leq(n, cap)


# --------------------- Kernel 1: LayerNorm + triangle-bias projection (row tile) ---------------
def _ln_tb_kernel(x_ref, lnw_ref, lnb_ref, wlt_ref, tb_ref, *, num_heads):
    x = x_ref[0]                                                     # [TM, N, C]
    mu = jnp.mean(x, axis=-1, keepdims=True)
    var = jnp.mean((x - mu) ** 2, axis=-1, keepdims=True)
    xn = (x - mu) * lax.rsqrt(var + LN_EPS)
    xn = xn * lnw_ref[0] + lnb_ref[0]                                # [TM, N, C]
    # tb[h, i, j] = sum_c xn[i, j, c] * W_lin[c, h]  -- stored lane-dense (last dim = N keys).
    for h in range(num_heads):                                       # tiny static loop
        tb_ref[0, h] = jnp.sum(xn * wlt_ref[h, :], axis=-1)          # [TM, N] full-tile store


# -------------------- Kernel 2: gated attention, one head for TI rows per step -----------------
def _attn_head_kernel(x_ref, mask_ref, tb_ref, lnw_ref, lnb_ref,
                      wq_ref, wk_ref, wv_ref, wg_ref, bg_ref, wo_ref, bo_ref,
                      out_ref, *, rows, seq, dim, head_dim, inf):
    h = pl.program_id(2)

    # Recompute the row LayerNorm from raw x (avoids an x_ln HBM round trip; hidden under MXU).
    x = x_ref[0]                                                     # [TI, N, C]
    mu = jnp.mean(x, axis=-1, keepdims=True)
    var = jnp.mean((x - mu) ** 2, axis=-1, keepdims=True)
    xn = (x - mu) * lax.rsqrt(var + LN_EPS) * lnw_ref[0] + lnb_ref[0]
    x2 = xn.reshape(rows * seq, dim)                                 # [TI*N, C]  big-M matmuls

    scale = 1.0 / (head_dim ** 0.5)
    q = jnp.dot(x2, wq_ref[0], preferred_element_type=jnp.float32) * scale   # [TI*N, D]
    k = jnp.dot(x2, wk_ref[0], preferred_element_type=jnp.float32)
    v = jnp.dot(x2, wv_ref[0], preferred_element_type=jnp.float32)
    g = jax.nn.sigmoid(jnp.dot(x2, wg_ref[0], preferred_element_type=jnp.float32)
                       + bg_ref[0])                                  # [TI*N, D]

    q3 = q.reshape(rows, seq, head_dim)
    k3 = k.reshape(rows, seq, head_dim)
    v3 = v.reshape(rows, seq, head_dim)

    # Batched over the TI row tile: 'tqd,tkd->tqk'
    logits = lax.dot_general(q3, k3, (((2,), (2,)), ((0,), (0,))),
                             preferred_element_type=jnp.float32)     # [TI, N, N]
    logits = logits + tb_ref[0, 0] + inf * (mask_ref[0] - 1.0)       # triangle + key mask bias
    m = jnp.max(logits, axis=-1, keepdims=True)
    p = jnp.exp(logits - m)
    a = p * pl.reciprocal(jnp.sum(p, axis=-1, keepdims=True), approx=True)

    # 'tqk,tkd->tqd'
    o = lax.dot_general(a, v3, (((2,), (1,)), ((0,), (0,))),
                        preferred_element_type=jnp.float32)          # [TI, N, D]
    og = o.reshape(rows * seq, head_dim) * g                         # gate (contiguous, no slicing)
    contrib = jnp.dot(og, wo_ref[0], preferred_element_type=jnp.float32)     # [TI*N, C]
    contrib = contrib.reshape(rows, seq, dim)

    @pl.when(h == 0)
    def _init():
        out_ref[0] = contrib + bo_ref[0]

    @pl.when(h > 0)
    def _acc():
        out_ref[0] = out_ref[0] + contrib


# --------------------------------------- Wrapper ----------------------------------------------
def triangle_attention(x, mask, params, *, num_heads, starting=True, inf=1e9):
    B, I, J, C = x.shape
    assert I == J, "pair representation must be square"
    assert C % num_heads == 0
    N, H = I, num_heads
    D = C // H

    if not starting:
        x = jnp.swapaxes(x, -2, -3)
        if mask is not None:
            mask = jnp.swapaxes(mask, -1, -2)
    if mask is None:
        mask = jnp.ones((B, N, N), jnp.float32)
    x = x.astype(jnp.float32)
    mask = mask.astype(jnp.float32)

    lnw = params["ln_w"].astype(jnp.float32).reshape(1, C)
    lnb = params["ln_b"].astype(jnp.float32).reshape(1, C)
    wlin_t = params["w_lin"].astype(jnp.float32).T                   # [H, C]

    # ---- Kernel 1: triangle bias, lane-dense [B, H, N, N], row-tiled ----
    TM = _pick_row_tile(N, C)
    tb = pl.pallas_call(
        functools.partial(_ln_tb_kernel, num_heads=H),
        out_shape=jax.ShapeDtypeStruct((B, H, N, N), jnp.float32),
        grid=(B, N // TM),
        in_specs=[pl.BlockSpec((1, TM, N, C), lambda b, m: (b, m, 0, 0)),
                  pl.BlockSpec((1, C), lambda b, m: (0, 0)),
                  pl.BlockSpec((1, C), lambda b, m: (0, 0)),
                  pl.BlockSpec((H, C), lambda b, m: (0, 0))],
        out_specs=pl.BlockSpec((1, H, TM, N), lambda b, m: (b, 0, m, 0)),
        compiler_params=pltpu.CompilerParams(
            dimension_semantics=("parallel", "parallel"),
            vmem_limit_bytes=_VMEM_LIMIT),
    )(x, lnw, lnb, wlin_t)

    # Per-head weight slabs (tiny wrapper-side reshapes; sliced by BlockSpec at zero cost).
    per_head = lambda w: jnp.transpose(w.astype(jnp.float32).reshape(C, H, D), (1, 0, 2))  # [H,C,D]
    wq_h = per_head(params["w_q"])
    wk_h = per_head(params["w_k"])
    wv_h = per_head(params["w_v"])
    wg_h = per_head(params["w_g"])
    bg_h = params["b_g"].astype(jnp.float32).reshape(H, 1, D)
    wo_h = params["w_o"].astype(jnp.float32).reshape(H, D, C)
    bo = params["b_o"].astype(jnp.float32).reshape(1, C)

    mask4 = mask[:, :, None, :]                                      # [B, N, 1, N] lane-dense

    # ---- Kernel 2: gated attention, grid (batch, row-tile, head) with head accumulation ----
    TI = _pick_ti(N)
    out = pl.pallas_call(
        functools.partial(_attn_head_kernel, rows=TI, seq=N, dim=C, head_dim=D, inf=inf),
        out_shape=jax.ShapeDtypeStruct((B, N, N, C), jnp.float32),
        grid=(B, N // TI, H),
        in_specs=[pl.BlockSpec((1, TI, N, C), lambda b, i, h: (b, i, 0, 0)),   # x rows (resident over h)
                  pl.BlockSpec((1, TI, 1, N), lambda b, i, h: (b, i, 0, 0)),   # mask rows
                  pl.BlockSpec((1, 1, N, N), lambda b, i, h: (b, h, 0, 0)),    # triangle bias, head h
                  pl.BlockSpec((1, C), lambda b, i, h: (0, 0)),                # ln_w
                  pl.BlockSpec((1, C), lambda b, i, h: (0, 0)),                # ln_b
                  pl.BlockSpec((1, C, D), lambda b, i, h: (h, 0, 0)),          # Wq[h]
                  pl.BlockSpec((1, C, D), lambda b, i, h: (h, 0, 0)),          # Wk[h]
                  pl.BlockSpec((1, C, D), lambda b, i, h: (h, 0, 0)),          # Wv[h]
                  pl.BlockSpec((1, C, D), lambda b, i, h: (h, 0, 0)),          # Wg[h]
                  pl.BlockSpec((1, 1, D), lambda b, i, h: (h, 0, 0)),          # bg[h]
                  pl.BlockSpec((1, D, C), lambda b, i, h: (h, 0, 0)),          # Wo[h]
                  pl.BlockSpec((1, C), lambda b, i, h: (0, 0))],               # bo
        out_specs=pl.BlockSpec((1, TI, N, C), lambda b, i, h: (b, i, 0, 0)),
        compiler_params=pltpu.CompilerParams(
            dimension_semantics=("parallel", "parallel", "arbitrary"),
            vmem_limit_bytes=_VMEM_LIMIT),
    )(x, mask4, tb, lnw, lnb, wq_h, wk_h, wv_h, wg_h, bg_h, wo_h, bo)

    if not starting:
        out = jnp.swapaxes(out, -2, -3)
    return out


# ------------------------------ Pure-JAX reference (for checking) -----------------------------
def reference_triangle_attention(x, mask, params, *, num_heads, starting=True, inf=1e9):
    if not starting:
        x = jnp.swapaxes(x, -2, -3)
        if mask is not None:
            mask = jnp.swapaxes(mask, -1, -2)
    B, I, J, C = x.shape
    H = num_heads
    D = C // H
    if mask is None:
        mask = jnp.ones((B, I, J), x.dtype)

    mu = jnp.mean(x, -1, keepdims=True)
    var = jnp.mean((x - mu) ** 2, -1, keepdims=True)
    xn = (x - mu) / jnp.sqrt(var + LN_EPS) * params["ln_w"] + params["ln_b"]

    tb = jnp.einsum("bijc,ch->bhij", xn, params["w_lin"])[:, None]       # [B,1,H,I,J]
    mask_bias = inf * (mask - 1.0)[:, :, None, None, :]                  # [B,I,1,1,J]

    scale = 1.0 / (D ** 0.5)
    heads = lambda y: jnp.transpose(y.reshape(B, I, J, H, D), (0, 1, 3, 2, 4))  # [B,I,H,J,D]
    q = heads(xn @ params["w_q"]) * scale
    k = heads(xn @ params["w_k"])
    v = heads(xn @ params["w_v"])
    logits = jnp.einsum("bihqd,bihkd->bihqk", q, k) + mask_bias + tb
    a = jax.nn.softmax(logits, axis=-1)
    o = jnp.einsum("bihqk,bihkd->bihqd", a, v)
    o = jnp.transpose(o, (0, 1, 3, 2, 4)).reshape(B, I, J, C)
    g = jax.nn.sigmoid(xn @ params["w_g"] + params["b_g"])
    out = (o * g) @ params["w_o"] + params["b_o"]
    if not starting:
        out = jnp.swapaxes(out, -2, -3)
    return out


# ------------------------------------------ Main ----------------------------------------------
if __name__ == "__main__":
    B, N, C, H = 2, 16, 32, 4   # batch, seq (I=J), dim, num_heads  -> head_dim = 8
    key = jax.random.PRNGKey(0)
    ks = jax.random.split(key, 12)

    x = jax.random.normal(ks[0], (B, N, N, C), jnp.float32)
    mask = (jax.random.uniform(ks[1], (B, N, N)) < 0.85).astype(jnp.float32)

    init = lambda k, shape, s=0.1: s * jax.random.normal(k, shape, jnp.float32)
    params = dict(
        ln_w=1.0 + init(ks[2], (C,), 0.02),
        ln_b=init(ks[3], (C,), 0.02),
        w_lin=init(ks[4], (C, H)),
        w_q=init(ks[5], (C, C)),
        w_k=init(ks[6], (C, C)),
        w_v=init(ks[7], (C, C)),
        w_g=init(ks[8], (C, C)),
        b_g=init(ks[9], (C,), 0.02),
        w_o=init(ks[10], (C, C)),
        b_o=init(ks[11], (C,), 0.02),
    )

    for starting in (True, False):
        out = jax.block_until_ready(
            triangle_attention(x, mask, params, num_heads=H, starting=starting))
        ref = reference_triangle_attention(x, mask, params, num_heads=H, starting=starting)
        np.testing.assert_allclose(np.asarray(out), np.asarray(ref), rtol=1e-3, atol=1e-3)

    print("KERNEL_OK")
</pallas_src>

<mosaic_0001>
module attributes {stable_mosaic.version = 11 : i64} {
  func.func @_ln_tb_kernel(%arg0: i32, %arg1: i32, %arg2: memref<1x16x16x32xf32, #tpu.memory_space<vmem>>, %arg3: memref<1x32xf32, #tpu.memory_space<vmem>>, %arg4: memref<1x32xf32, #tpu.memory_space<vmem>>, %arg5: memref<4x32xf32, #tpu.memory_space<vmem>>, %arg6: memref<1x4x16x16xf32, #tpu.memory_space<vmem>>) attributes {dimension_semantics = [#tpu.dimension_semantics<parallel>, #tpu.dimension_semantics<parallel>], iteration_bounds = array<i64: 2, 1>, scalar_prefetch = 0 : i64, scratch_operands = 0 : i64, tpu.core_type = #tpu.core_type<tc>, window_params = [{transform_indices = @transform_0, window_bounds = array<i64: 1, 16, 16, 32>}, {pipeline_mode = #tpu.pipeline_mode<synchronous>, transform_indices = @transform_1, window_bounds = array<i64: 1, 32>}, {pipeline_mode = #tpu.pipeline_mode<synchronous>, transform_indices = @transform_2, window_bounds = array<i64: 1, 32>}, {pipeline_mode = #tpu.pipeline_mode<synchronous>, transform_indices = @transform_3, window_bounds = array<i64: 4, 32>}, {transform_indices = @transform_4, window_bounds = array<i64: 1, 4, 16, 16>}]} {
    %c0 = arith.constant 0 : index
    %c0_0 = arith.constant 0 : index
    %c0_1 = arith.constant 0 : index
    %c0_2 = arith.constant 0 : index
    %0 = vector.load %arg2[%c0, %c0_0, %c0_1, %c0_2] : memref<1x16x16x32xf32, #tpu.memory_space<vmem>>, vector<1x16x16x32xf32>
    %1 = vector.shape_cast %0 : vector<1x16x16x32xf32> to vector<16x16x32xf32>
    %cst = arith.constant dense<0.000000e+00> : vector<16x16xf32>
    %2 = vector.multi_reduction <add>, %1, %cst [2] : vector<16x16x32xf32> to vector<16x16xf32>
    %3 = vector.shape_cast %2 : vector<16x16xf32> to vector<16x16x1xf32>
    %cst_3 = arith.constant 3.200000e+01 : f32
    %4 = vector.broadcast %cst_3 : f32 to vector<16x16x1xf32>
    %5 = arith.divf %3, %4 : vector<16x16x1xf32>
    %6 = vector.broadcast %5 : vector<16x16x1xf32> to vector<16x16x32xf32>
    %7 = arith.subf %1, %6 : vector<16x16x32xf32>
    %8 = arith.mulf %7, %7 : vector<16x16x32xf32>
    %cst_4 = arith.constant dense<0.000000e+00> : vector<16x16xf32>
    %9 = vector.multi_reduction <add>, %8, %cst_4 [2] : vector<16x16x32xf32> to vector<16x16xf32>
    %10 = vector.shape_cast %9 : vector<16x16xf32> to vector<16x16x1xf32>
    %cst_5 = arith.constant 3.200000e+01 : f32
    %11 = vector.broadcast %cst_5 : f32 to vector<16x16x1xf32>
    %12 = arith.divf %10, %11 : vector<16x16x1xf32>
    %13 = vector.broadcast %5 : vector<16x16x1xf32> to vector<16x16x32xf32>
    %14 = arith.subf %1, %13 : vector<16x16x32xf32>
    %cst_6 = arith.constant 9.99999974E-6 : f32
    %15 = vector.broadcast %cst_6 : f32 to vector<16x16x1xf32>
    %16 = arith.addf %12, %15 : vector<16x16x1xf32>
    %17 = math.rsqrt %16 : vector<16x16x1xf32>
    %18 = vector.broadcast %17 : vector<16x16x1xf32> to vector<16x16x32xf32>
    %19 = arith.mulf %14, %18 : vector<16x16x32xf32>
    %c0_7 = arith.constant 0 : index
    %c0_8 = arith.constant 0 : index
    %20 = vector.load %arg3[%c0_7, %c0_8] : memref<1x32xf32, #tpu.memory_space<vmem>>, vector<1x32xf32>
    %21 = vector.shape_cast %20 : vector<1x32xf32> to vector<32xf32>
    %22 = vector.shape_cast %21 : vector<32xf32> to vector<1x1x32xf32>
    %23 = vector.broadcast %22 : vector<1x1x32xf32> to vector<16x16x32xf32>
    %24 = arith.mulf %19, %23 : vector<16x16x32xf32>
    %c0_9 = arith.constant 0 : index
    %c0_10 = arith.constant 0 : index
    %25 = vector.load %arg4[%c0_9, %c0_10] : memref<1x32xf32, #tpu.memory_space<vmem>>, vector<1x32xf32>
    %26 = vector.shape_cast %25 : vector<1x32xf32> to vector<32xf32>
    %27 = vector.shape_cast %26 : vector<32xf32> to vector<1x1x32xf32>
    %28 = vector.broadcast %27 : vector<1x1x32xf32> to vector<16x16x32xf32>
    %29 = arith.addf %24, %28 : vector<16x16x32xf32>
    %c0_11 = arith.constant 0 : index
    %c0_12 = arith.constant 0 : index
    %30 = vector.load %arg5[%c0_11, %c0_12] : memref<4x32xf32, #tpu.memory_space<vmem>>, vector<1x32xf32>
    %31 = vector.shape_cast %30 : vector<1x32xf32> to vector<32xf32>
    %32 = vector.shape_cast %31 : vector<32xf32> to vector<1x1x32xf32>
    %33 = vector.broadcast %32 : vector<1x1x32xf32> to vector<16x16x32xf32>
    %34 = arith.mulf %29, %33 : vector<16x16x32xf32>
    %cst_13 = arith.constant dense<0.000000e+00> : vector<16x16xf32>
    %35 = vector.multi_reduction <add>, %34, %cst_13 [2] : vector<16x16x32xf32> to vector<16x16xf32>
    %c0_14 = arith.constant 0 : index
    %c0_15 = arith.constant 0 : index
    %c0_16 = arith.constant 0 : index
    %c0_17 = arith.constant 0 : index
    %36 = vector.load %arg6[%c0_14, %c0_15, %c0_16, %c0_17] : memref<1x4x16x16xf32, #tpu.memory_space<vmem>>, vector<1x1x16x16xf32>
    %37 = vector.shape_cast %36 : vector<1x1x16x16xf32> to vector<16x16xf32>
    %38 = vector.shape_cast %35 : vector<16x16xf32> to vector<1x1x16x16xf32>
    tpu.vector_store %arg6[%c0_14, %c0_15, %c0_16, %c0_17], %38 {strides = array<i32>} : memref<1x4x16x16xf32, #tpu.memory_space<vmem>>, vector<1x1x16x16xf32>,
    %c1 = arith.constant 1 : index
    %c0_18 = arith.constant 0 : index
    %39 = vector.load %arg5[%c1, %c0_18] : memref<4x32xf32, #tpu.memory_space<vmem>>, vector<1x32xf32>
    %40 = vector.shape_cast %39 : vector<1x32xf32> to vector<32xf32>
    %41 = vector.shape_cast %40 : vector<32xf32> to vector<1x1x32xf32>
    %42 = vector.broadcast %41 : vector<1x1x32xf32> to vector<16x16x32xf32>
    %43 = arith.mulf %29, %42 : vector<16x16x32xf32>
    %cst_19 = arith.constant dense<0.000000e+00> : vector<16x16xf32>
    %44 = vector.multi_reduction <add>, %43, %cst_19 [2] : vector<16x16x32xf32> to vector<16x16xf32>
    %c0_20 = arith.constant 0 : index
    %c1_21 = arith.constant 1 : index
    %c0_22 = arith.constant 0 : index
    %c0_23 = arith.constant 0 : index
    %45 = vector.load %arg6[%c0_20, %c1_21, %c0_22, %c0_23] : memref<1x4x16x16xf32, #tpu.memory_space<vmem>>, vector<1x1x16x16xf32>
    %46 = vector.shape_cast %45 : vector<1x1x16x16xf32> to vector<16x16xf32>
    %47 = vector.shape_cast %44 : vector<16x16xf32> to vector<1x1x16x16xf32>
    tpu.vector_store %arg6[%c0_20, %c1_21, %c0_22, %c0_23], %47 {strides = array<i32>} : memref<1x4x16x16xf32, #tpu.memory_space<vmem>>, vector<1x1x16x16xf32>,
    %c2 = arith.constant 2 : index
    %c0_24 = arith.constant 0 : index
    %48 = vector.load %arg5[%c2, %c0_24] : memref<4x32xf32, #tpu.memory_space<vmem>>, vector<1x32xf32>
    %49 = vector.shape_cast %48 : vector<1x32xf32> to vector<32xf32>
    %50 = vector.shape_cast %49 : vector<32xf32> to vector<1x1x32xf32>
    %51 = vector.broadcast %50 : vector<1x1x32xf32> to vector<16x16x32xf32>
    %52 = arith.mulf %29, %51 : vector<16x16x32xf32>
    %cst_25 = arith.constant dense<0.000000e+00> : vector<16x16xf32>
    %53 = vector.multi_reduction <add>, %52, %cst_25 [2] : vector<16x16x32xf32> to vector<16x16xf32>
    %c0_26 = arith.constant 0 : index
    %c2_27 = arith.constant 2 : index
    %c0_28 = arith.constant 0 : index
    %c0_29 = arith.constant 0 : index
    %54 = vector.load %arg6[%c0_26, %c2_27, %c0_28, %c0_29] : memref<1x4x16x16xf32, #tpu.memory_space<vmem>>, vector<1x1x16x16xf32>
    %55 = vector.shape_cast %54 : vector<1x1x16x16xf32> to vector<16x16xf32>
    %56 = vector.shape_cast %53 : vector<16x16xf32> to vector<1x1x16x16xf32>
    tpu.vector_store %arg6[%c0_26, %c2_27, %c0_28, %c0_29], %56 {strides = array<i32>} : memref<1x4x16x16xf32, #tpu.memory_space<vmem>>, vector<1x1x16x16xf32>,
    %c3 = arith.constant 3 : index
    %c0_30 = arith.constant 0 : index
    %57 = vector.load %arg5[%c3, %c0_30] : memref<4x32xf32, #tpu.memory_space<vmem>>, vector<1x32xf32>
    %58 = vector.shape_cast %57 : vector<1x32xf32> to vector<32xf32>
    %59 = vector.shape_cast %58 : vector<32xf32> to vector<1x1x32xf32>
    %60 = vector.broadcast %59 : vector<1x1x32xf32> to vector<16x16x32xf32>
    %61 = arith.mulf %29, %60 : vector<16x16x32xf32>
    %cst_31 = arith.constant dense<0.000000e+00> : vector<16x16xf32>
    %62 = vector.multi_reduction <add>, %61, %cst_31 [2] : vector<16x16x32xf32> to vector<16x16xf32>
    %c0_32 = arith.constant 0 : index
    %c3_33 = arith.constant 3 : index
    %c0_34 = arith.constant 0 : index
    %c0_35 = arith.constant 0 : index
    %63 = vector.load %arg6[%c0_32, %c3_33, %c0_34, %c0_35] : memref<1x4x16x16xf32, #tpu.memory_space<vmem>>, vector<1x1x16x16xf32>
    %64 = vector.shape_cast %63 : vector<1x1x16x16xf32> to vector<16x16xf32>
    %65 = vector.shape_cast %62 : vector<16x16xf32> to vector<1x1x16x16xf32>
    tpu.vector_store %arg6[%c0_32, %c3_33, %c0_34, %c0_35], %65 {strides = array<i32>} : memref<1x4x16x16xf32, #tpu.memory_space<vmem>>, vector<1x1x16x16xf32>,
    return
  }
  func.func @transform_0(%arg0: i32, %arg1: i32) -> (i32, i32, i32, i32) {
    %c0_i32 = arith.constant 0 : i32
    %c0_i32_0 = arith.constant 0 : i32
    %c0_i32_1 = arith.constant 0 : i32
    return %arg0, %arg1, %c0_i32, %c0_i32_0 : i32, i32, i32, i32
  }
  func.func @transform_1(%arg0: i32, %arg1: i32) -> (i32, i32) {
    %c0_i32 = arith.constant 0 : i32
    %c0_i32_0 = arith.constant 0 : i32
    %c0_i32_1 = arith.constant 0 : i32
    return %c0_i32, %c0_i32_0 : i32, i32
  }
  func.func @transform_2(%arg0: i32, %arg1: i32) -> (i32, i32) {
    %c0_i32 = arith.constant 0 : i32
    %c0_i32_0 = arith.constant 0 : i32
    %c0_i32_1 = arith.constant 0 : i32
    return %c0_i32, %c0_i32_0 : i32, i32
  }
  func.func @transform_3(%arg0: i32, %arg1: i32) -> (i32, i32) {
    %c0_i32 = arith.constant 0 : i32
    %c0_i32_0 = arith.constant 0 : i32
    %c0_i32_1 = arith.constant 0 : i32
    return %c0_i32, %c0_i32_0 : i32, i32
  }
  func.func @transform_4(%arg0: i32, %arg1: i32) -> (i32, i32, i32, i32) {
    %c0_i32 = arith.constant 0 : i32
    %c0_i32_0 = arith.constant 0 : i32
    %c0_i32_1 = arith.constant 0 : i32
    return %arg0, %c0_i32, %arg1, %c0_i32_0 : i32, i32, i32, i32
  }
}

</mosaic_0001>

<llo_original>
// kernel: tpu_custom_call.1
$region0: #{tpu_custom_call.1}
  #allocation0 [shape = 'u32[]', space=smem, size = 0x4, offset = 0x4, fixed_abs, tag = 'smem constant byte address 0x4 - core index']
  #allocation1 [shape = 'u32[144,128]{1,0:T(1,128)}', space=vmem, size = 0x12000, scoped, tag = 'internal scratch']
  %s0 = inlined_call_operand.hbm [shape: f32[2,16,16,32], index: 0, kind: input, shape index: {}]
  %s1 = inlined_call_operand.vmem [shape: f32[1,32], index: 1, kind: input, shape index: {}]
  %s2 = inlined_call_operand.vmem [shape: f32[1,32], index: 2, kind: input, shape index: {}]
  %s3 = inlined_call_operand.vmem [shape: f32[4,32], index: 3, kind: input, shape index: {}]
  %s4 = inlined_call_operand.hbm [shape: f32[2,4,16,16], index: 4, kind: output, shape index: {}]
  %s5 = sld [smem:[#allocation0]]
  $region53: #{tpu_custom_call.1} parent=0
    _
  %s7 = ssub.s32 1, %s5
  %s8 = scalar_select 0, %s7, %s5
  $region1: #{tpu_custom_call.1} parent=0
    #allocation2 [shape = 'u8[262144]{0}', space=vmem, size = 0x40000, scoped, tag = 'input window, operand 0']
    #allocation3 [shape = 's32[2]{0}', space=sflag, size = 0x8, scoped, tag = 'scoped memory for tpu_custom_call.1']
    #allocation4 [shape = 's32[2]{0}', space=sflag, size = 0x8, scoped, tag = 'scoped memory for tpu_custom_call.1']
    #allocation5 [shape = 'u8[65536]{0}', space=vmem, size = 0x10000, scoped, tag = 'output window, operand 0']
    %9 = vsyncpa [#allocation3], 0
    %s10 = scalar_lea.sflag [#allocation3], 1
    %11 = vsyncpa %s10, 0
    %12 = vsyncpa [#allocation4], 0
    %s13 = scalar_lea.sflag [#allocation4], 1
    %14 = vsyncpa %s13, 0
    loop: start=0, step=1, limit=4
    $region2: #{tpu_custom_call.1} parent=1 // loop_pre_header
      _
    $region3: #{tpu_custom_call.1} parent=1 // loop_header
      %s16 = sphi 0, %s20
      %p17 = scmp.ge.s32.totalorder %s16, 4
      %s23 = sphi 0, %s35
      %s24 = sphi 0, %s31
      %s25 = sphi 0, %s23
      %s26 = sphi 0, %s24
      %s27 = sphi 0, %s25
      %s28 = sphi 0, %s26
      %s40 = sphi 0, %s42
      %s43 = sphi 0, %s40
      %s44 = sphi 0, %s43
      %s60 = sphi 0, %s44
      %s64 = sphi 0, %s64
      %s66 = sphi 0, %s64
      %s67 = sphi 0, %s66
      %s81 = sphi 0, %s67
      %s85 = sphi 0, %s85
      %s87 = sphi 0, %s85
      %s88 = sphi 0, %s87
      %s102 = sphi 0, %s88
      %s106 = sphi 0, %s106
      %s108 = sphi 0, %s106
      %s109 = sphi 0, %s108
      %s123 = sphi 0, %s109
      %s131 = sphi 0, %s133
      %s134 = sphi 0, %s131
      %s135 = sphi 0, %s134
      %s151 = sphi 0, %s135
    $region4: #{tpu_custom_call.1} parent=1 // loop_header_branch
      %19 = sbr.rel (%p17) target = $region8
    $region5: #{tpu_custom_call.1} parent=1 // loop_body
      %s21 = ssub.s32 %s16, 1
      %s22 = ssub.s32 %s16, 2
      %s29 = sadd.s32 1, %s24
      %p30 = scmp.ge.s32.totalorder %s29, 1
      %s31 = scalar_select %p30, 0, %s29
      %s32 = sadd.s32 1, %s23
      %s33 = scalar_select %p30, %s32, %s23
      %p34 = scmp.ge.s32.totalorder %s33, 2
      %s35 = scalar_select %p34, 0, %s33
      %s36 = ssub.s32 %s23, %s35
      %s37 = ssub.s32 %s24, %s31
      %s38 = sor.u32 %s36, %s37
      %p39 = scmp.eq.s32.totalorder %s38, 0
      %s41 = sadd.s32 %s40, 1
      %s42 = scalar_select %p39, %s40, %s41
      %p45 = pneg %p39
      %p46 = scmp.eq.s32.totalorder %s16, 1
      %p47 = por %p45, %p46
      %p48 = scmp.ne.s32.totalorder %s40, %s43
      %p49 = scmp.eq.s32.totalorder %s16, 0
      %p50 = por %p48, %p49
      %p51 = scmp.ne.s32.totalorder %s40, %s43
      %p52 = scmp.eq.s32.totalorder %s21, 1
      %p53 = por %p51, %p52
      %p54 = scmp.ne.s32.totalorder %s43, %s44
      %p55 = scmp.eq.s32.totalorder %s21, 0
      %p56 = por %p54, %p55
      %p57 = scmp.ne.s32.totalorder %s43, %s44
      %p58 = scmp.eq.s32.totalorder %s22, 1
      %p59 = por %p57, %p58
      %p61 = scmp.ne.s32.totalorder %s44, %s60
      %p62 = scmp.eq.s32.totalorder %s22, 0
      %p63 = por %p61, %p62
      %s65 = sadd.s32 %s64, 1
      %p68 = scmp.eq.s32.totalorder %s16, 1
      %p69 = scmp.ne.s32.totalorder %s64, %s66
      %p70 = scmp.eq.s32.totalorder %s16, 0
      %p71 = por %p69, %p70
      %p72 = scmp.ne.s32.totalorder %s64, %s66
      %p73 = scmp.eq.s32.totalorder %s21, 1
      %p74 = por %p72, %p73
      %p75 = scmp.ne.s32.totalorder %s66, %s67
      %p76 = scmp.eq.s32.totalorder %s21, 0
      %p77 = por %p75, %p76
      %p78 = scmp.ne.s32.totalorder %s66, %s67
      %p79 = scmp.eq.s32.totalorder %s22, 1
      %p80 = por %p78, %p79
      %p82 = scmp.ne.s32.totalorder %s67, %s81
      %p83 = scmp.eq.s32.totalorder %s22, 0
      %p84 = por %p82, %p83
      %s86 = sadd.s32 %s85, 1
      %p89 = scmp.eq.s32.totalorder %s16, 1
      %p90 = scmp.ne.s32.totalorder %s85, %s87
      %p91 = scmp.eq.s32.totalorder %s16, 0
      %p92 = por %p90, %p91
      %p93 = scmp.ne.s32.totalorder %s85, %s87
      %p94 = scmp.eq.s32.totalorder %s21, 1
      %p95 = por %p93, %p94
      %p96 = scmp.ne.s32.totalorder %s87, %s88
      %p97 = scmp.eq.s32.totalorder %s21, 0
      %p98 = por %p96, %p97
      %p99 = scmp.ne.s32.totalorder %s87, %s88
      %p100 = scmp.eq.s32.totalorder %s22, 1
      %p101 = por %p99, %p100
      %p103 = scmp.ne.s32.totalorder %s88, %s102
      %p104 = scmp.eq.s32.totalorder %s22, 0
      %p105 = por %p103, %p104
      %s107 = sadd.s32 %s106, 1
      %p110 = scmp.eq.s32.totalorder %s16, 1
      %p111 = scmp.ne.s32.totalorder %s106, %s108
      %p112 = scmp.eq.s32.totalorder %s16, 0
      %p113 = por %p111, %p112
      %p114 = scmp.ne.s32.totalorder %s106, %s108
      %p115 = scmp.eq.s32.totalorder %s21, 1
      %p116 = por %p114, %p115
      %p117 = scmp.ne.s32.totalorder %s108, %s109
      %p118 = scmp.eq.s32.totalorder %s21, 0
      %p119 = por %p117, %p118
      %p120 = scmp.ne.s32.totalorder %s108, %s109
      %p121 = scmp.eq.s32.totalorder %s22, 1
      %p122 = por %p120, %p121
      %p124 = scmp.ne.s32.totalorder %s109, %s123
      %p125 = scmp.eq.s32.totalorder %s22, 0
      %p126 = por %p124, %p125
      %s127 = ssub.s32 %s23, %s35
      %s128 = ssub.s32 %s24, %s31
      %s129 = sor.u32 %s127, %s128
      %p130 = scmp.eq.s32.totalorder %s129, 0
      %s132 = sadd.s32 %s131, 1
      %s133 = scalar_select %p130, %s131, %s132
      %p136 = pneg %p130
      %p137 = scmp.eq.s32.totalorder %s16, 1
      %p138 = por %p136, %p137
      %p139 = scmp.ne.s32.totalorder %s131, %s134
      %p140 = scmp.eq.s32.totalorder %s16, 0
      %p141 = por %p139, %p140
      %p142 = scmp.ne.s32.totalorder %s131, %s134
      %p143 = scmp.eq.s32.totalorder %s21, 1
      %p144 = por %p142, %p143
      %p145 = scmp.ne.s32.totalorder %s134, %s135
      %p146 = scmp.eq.s32.totalorder %s21, 0
      %p147 = por %p145, %p146
      %p148 = scmp.ne.s32.totalorder %s134, %s135
      %p149 = scmp.eq.s32.totalorder %s22, 1
      %p150 = por %p148, %p149
      %p152 = scmp.ne.s32.totalorder %s135, %s151
      %p153 = scmp.eq.s32.totalorder %s22, 0
      %p154 = por %p152, %p153
      %p155 = scmp.le.s32.totalorder 1, %s16
      %p156 = scmp.lt.s32.totalorder %s16, 3
      %p157 = pnand %p155, %p156
      %p158 = pneg %p157
      // Predicated region
      $region9: #{tpu_custom_call.1} parent=5 // pred_check
        _
      $region10: #{tpu_custom_call.1} parent=5 // pred_check_branch
        %160 = sbr.rel (%p157) target = $region12
      $region11: #{tpu_custom_call.1} parent=5 // pred_region
        %s161 = ssub.s32 %s16, 1
        // Predicated region
        $region13: #{tpu_custom_call.1} parent=11 // pred_check
          %p162 = pneg %p77
        $region14: #{tpu_custom_call.1} parent=11 // pred_check_branch
          %164 = sbr.rel (%p162) target = $region16
        $region15: #{tpu_custom_call.1} parent=11 // pred_region
          _
        $region16: #{tpu_custom_call.1} parent=11 // pred_fallthru
          _
        // Predicated region
        $region17: #{tpu_custom_call.1} parent=11 // pred_check
          %p165 = pneg %p98
        $region18: #{tpu_custom_call.1} parent=11 // pred_check_branch
          %167 = sbr.rel (%p165) target = $region20
        $region19: #{tpu_custom_call.1} parent=11 // pred_region
          _
        $region20: #{tpu_custom_call.1} parent=11 // pred_fallthru
          _
        // Predicated region
        $region21: #{tpu_custom_call.1} parent=11 // pred_check
          %p168 = pneg %p119
        $region22: #{tpu_custom_call.1} parent=11 // pred_check_branch
          %170 = sbr.rel (%p168) target = $region24
        $region23: #{tpu_custom_call.1} parent=11 // pred_region
          _
        $region24: #{tpu_custom_call.1} parent=11 // pred_fallthru
          _
      $region12: #{tpu_custom_call.1} parent=5 // pred_fallthru
        _
      %p171 = scmp.lt.s32.totalorder %s16, 2
      // Predicated region
      $region25: #{tpu_custom_call.1} parent=5 // pred_check
        %p172 = pneg %p171
      $region26: #{tpu_custom_call.1} parent=5 // pred_check_branch
        %174 = sbr.rel (%p172) target = $region28
      $region27: #{tpu_custom_call.1} parent=5 // pred_region
        // Predicated region
        $region29: #{tpu_custom_call.1} parent=27 // pred_check
          %p175 = pneg %p50
        $region30: #{tpu_custom_call.1} parent=27 // pred_check_branch
          %177 = sbr.rel (%p175) target = $region32
        $region31: #{tpu_custom_call.1} parent=27 // pred_region
          %s178 = sand.u32 %s40, 1
          %s179 = scalar_lea.sflag [#allocation3], %s178
          %s180 = sand.u32 %s40, 1
          %s181 = smul.addr %s180, 256
          %s182 = scalar_lea.vmem [#allocation2], %s181
          %s183 = smul.u32 16, %s24
          %s185 = ssub.s32 4096, 4096
          %186 = vsyncadd %s179, %s185
          %s187 = smul.addr %s183, 2
          %s188 = smul.addr %s23, 32
          %s189 = sadd.s32 %s187, %s188
          %s190 = smul.addr %s189, 128
          %s191 = scalar_lea.hbm %s0, %s190
          %s192 = sshll.u32 %s182, 4
          %s193 = int_to_ptr.vmem [resolvable:$true] %s192
          %198 = dma.hbm_to_vmem [thread:$0]  %s191, 4096, %s193, %s179, 128, 128, 8
        $region32: #{tpu_custom_call.1} parent=27 // pred_fallthru
          _
      $region28: #{tpu_custom_call.1} parent=5 // pred_fallthru
        _
      %p199 = scmp.le.s32.totalorder 1, %s16
      %p200 = scmp.lt.s32.totalorder %s16, 3
      %p201 = pnand %p199, %p200
      %p202 = pneg %p201
      // Predicated region
      $region33: #{tpu_custom_call.1} parent=5 // pred_check
        _
      $region34: #{tpu_custom_call.1} parent=5 // pred_check_branch
        %204 = sbr.rel (%p201) target = $region36
      $region35: #{tpu_custom_call.1} parent=5 // pred_region
        %s205 = ssub.s32 %s16, 1
        %s206 = sand.u32 %s43, 1
        %s207 = scalar_lea.sflag [#allocation3], %s206
        %s208 = sand.u32 %s43, 1
        %s209 = smul.addr %s208, 256
        %s210 = scalar_lea.vmem [#allocation2], %s209
        // Predicated region
        $region37: #{tpu_custom_call.1} parent=35 // pred_check
          %p211 = pneg %p56
        $region38: #{tpu_custom_call.1} parent=35 // pred_check_branch
          %213 = sbr.rel (%p211) target = $region40
        $region39: #{tpu_custom_call.1} parent=35 // pred_region
          %214 = dma.done %s207, 4096
        $region40: #{tpu_custom_call.1} parent=35 // pred_fallthru
          _
        %s215 = sand.u32 %s43, 1
        %s216 = scalar_lea.sflag [#allocation3], %s215
        %s217 = sand.u32 %s43, 1
        %s218 = smul.addr %s217, 256
        %s219 = scalar_lea.vmem [#allocation2], %s218
        %p220 = pneg %p56
        %p221 = pneg %p53
        %p222 = pneg %p77
        %p223 = pneg %p74
        %p224 = pneg %p98
        %p225 = pneg %p95
        %p226 = pneg %p119
        %p227 = pneg %p116
        %p228 = pneg %p147
        %p229 = pneg %p144
        %s230 = sand.u32 %s134, 1
        %s231 = scalar_lea.sflag [#allocation4], %s230
        %s232 = sand.u32 %s134, 1
        %s233 = smul.addr %s232, 64
        %s234 = scalar_lea.vmem [#allocation5], %s233
        %s235 = smul.u32 16, %s26
        %s236 = smul.u32 2, %s26
        %v237 = vld [vmem:[%s210] sm:$0xff]
        %v238 = vld [vmem:[%s210 + $0x8] sm:$0xff]
        %v239 = vld [vmem:[%s210 + $0x10] sm:$0xff]
        %v240 = vld [vmem:[%s210 + $0x18] sm:$0xff]
        %v241 = vld [vmem:[%s210 + $0x20] sm:$0xff]
        %v242 = vld [vmem:[%s210 + $0x28] sm:$0xff]
        %v243 = vld [vmem:[%s210 + $0x30] sm:$0xff]
        %v244 = vld [vmem:[%s210 + $0x38] sm:$0xff]
        %v245 = vld [vmem:[%s210 + $0x40] sm:$0xff]
        %v246 = vld [vmem:[%s210 + $0x48] sm:$0xff]
        %v247 = vld [vmem:[%s210 + $0x50] sm:$0xff]
        %v248 = vld [vmem:[%s210 + $0x58] sm:$0xff]
        %v249 = vld [vmem:[%s210 + $0x60] sm:$0xff]
        %v250 = vld [vmem:[%s210 + $0x68] sm:$0xff]
        %v251 = vld [vmem:[%s210 + $0x70] sm:$0xff]
        %v252 = vld [vmem:[%s210 + $0x78] sm:$0xff]
        %v253 = vld [vmem:[%s210 + $0x80] sm:$0xff]
        %v254 = vld [vmem:[%s210 + $0x88] sm:$0xff]
        %v255 = vld [vmem:[%s210 + $0x90] sm:$0xff]
        %v256 = vld [vmem:[%s210 + $0x98] sm:$0xff]
        %v257 = vld [vmem:[%s210 + $0xa0] sm:$0xff]
        %v258 = vld [vmem:[%s210 + $0xa8] sm:$0xff]
        %v259 = vld [vmem:[%s210 + $0xb0] sm:$0xff]
        %v260 = vld [vmem:[%s210 + $0xb8] sm:$0xff]
        %v261 = vld [vmem:[%s210 + $0xc0] sm:$0xff]
        %v262 = vld [vmem:[%s210 + $0xc8] sm:$0xff]
        %v263 = vld [vmem:[%s210 + $0xd0] sm:$0xff]
        %v264 = vld [vmem:[%s210 + $0xd8] sm:$0xff]
        %v265 = vld [vmem:[%s210 + $0xe0] sm:$0xff]
        %v266 = vld [vmem:[%s210 + $0xe8] sm:$0xff]
        %v267 = vld [vmem:[%s210 + $0xf0] sm:$0xff]
        %v268 = vld [vmem:[%s210 + $0xf8] sm:$0xff]
        %vm269 = vcmask 261120
        %v270 = vsel %vm269, %v237, 0.0
        %271 = vadd.xlane.f32.xlu0 %v270
        %v272 = vpop.xlane.xlu0 %271
        %v273 = vsel %vm269, %v238, 0.0
        %274 = vadd.xlane.f32.xlu0 %v273
        %v275 = vpop.xlane.xlu0 %274
        %v276 = vsel %vm269, %v239, 0.0
        %277 = vadd.xlane.f32.xlu0 %v276
        %v278 = vpop.xlane.xlu0 %277
        %v279 = vsel %vm269, %v240, 0.0
        %280 = vadd.xlane.f32.xlu0 %v279
        %v281 = vpop.xlane.xlu0 %280
        %v282 = vsel %vm269, %v241, 0.0
        %283 = vadd.xlane.f32.xlu0 %v282
        %v284 = vpop.xlane.xlu0 %283
        %v285 = vsel %vm269, %v242, 0.0
        %286 = vadd.xlane.f32.xlu0 %v285
        %v287 = vpop.xlane.xlu0 %286
        %v288 = vsel %vm269, %v243, 0.0
        %289 = vadd.xlane.f32.xlu0 %v288
        %v290 = vpop.xlane.xlu0 %289
        %v291 = vsel %vm269, %v244, 0.0
        %292 = vadd.xlane.f32.xlu0 %v291
        %v293 = vpop.xlane.xlu0 %292
        %v294 = vsel %vm269, %v245, 0.0
        %295 = vadd.xlane.f32.xlu0 %v294
        %v296 = vpop.xlane.xlu0 %295
        %v297 = vsel %vm269, %v246, 0.0
        %298 = vadd.xlane.f32.xlu0 %v297
        %v299 = vpop.xlane.xlu0 %298
        %v300 = vsel %vm269, %v247, 0.0
        %301 = vadd.xlane.f32.xlu0 %v300
        %v302 = vpop.xlane.xlu0 %301
        %v303 = vsel %vm269, %v248, 0.0
        %304 = vadd.xlane.f32.xlu0 %v303
        %v305 = vpop.xlane.xlu0 %304
        %v306 = vsel %vm269, %v249, 0.0
        %307 = vadd.xlane.f32.xlu0 %v306
        %v308 = vpop.xlane.xlu0 %307
        %v309 = vsel %vm269, %v250, 0.0
        %310 = vadd.xlane.f32.xlu0 %v309
        %v311 = vpop.xlane.xlu0 %310
        %v312 = vsel %vm269, %v251, 0.0
        %313 = vadd.xlane.f32.xlu0 %v312
        %v314 = vpop.xlane.xlu0 %313
        %v315 = vsel %vm269, %v252, 0.0
        %316 = vadd.xlane.f32.xlu0 %v315
        %v317 = vpop.xlane.xlu0 %316
        %v318 = vsel %vm269, %v253, 0.0
        %319 = vadd.xlane.f32.xlu0 %v318
        %v320 = vpop.xlane.xlu0 %319
        %v321 = vsel %vm269, %v254, 0.0
        %322 = vadd.xlane.f32.xlu0 %v321
        %v323 = vpop.xlane.xlu0 %322
        %v324 = vsel %vm269, %v255, 0.0
        %325 = vadd.xlane.f32.xlu0 %v324
        %v326 = vpop.xlane.xlu0 %325
        %v327 = vsel %vm269, %v256, 0.0
        %328 = vadd.xlane.f32.xlu0 %v327
        %v329 = vpop.xlane.xlu0 %328
        %v330 = vsel %vm269, %v257, 0.0
        %331 = vadd.xlane.f32.xlu0 %v330
        %v332 = vpop.xlane.xlu0 %331
        %v333 = vsel %vm269, %v258, 0.0
        %334 = vadd.xlane.f32.xlu0 %v333
        %v335 = vpop.xlane.xlu0 %334
        %v336 = vsel %vm269, %v259, 0.0
        %337 = vadd.xlane.f32.xlu0 %v336
        %v338 = vpop.xlane.xlu0 %337
        %v339 = vsel %vm269, %v260, 0.0
        %340 = vadd.xlane.f32.xlu0 %v339
        %v341 = vpop.xlane.xlu0 %340
        %v342 = vsel %vm269, %v261, 0.0
        %343 = vadd.xlane.f32.xlu0 %v342
        %v344 = vpop.xlane.xlu0 %343
        %v345 = vsel %vm269, %v262, 0.0
        %346 = vadd.xlane.f32.xlu0 %v345
        %v347 = vpop.xlane.xlu0 %346
        %v348 = vsel %vm269, %v263, 0.0
        %349 = vadd.xlane.f32.xlu0 %v348
        %v350 = vpop.xlane.xlu0 %349
        %v351 = vsel %vm269, %v264, 0.0
        %352 = vadd.xlane.f32.xlu0 %v351
        %v353 = vpop.xlane.xlu0 %352
        %v354 = vsel %vm269, %v265, 0.0
        %355 = vadd.xlane.f32.xlu0 %v354
        %v356 = vpop.xlane.xlu0 %355
        %v357 = vsel %vm269, %v266, 0.0
        %358 = vadd.xlane.f32.xlu0 %v357
        %v359 = vpop.xlane.xlu0 %358
        %v360 = vsel %vm269, %v267, 0.0
        %361 = vadd.xlane.f32.xlu0 %v360
        %v362 = vpop.xlane.xlu0 %361
        %v363 = vsel %vm269, %v268, 0.0
        %364 = vadd.xlane.f32.xlu0 %v363
        %v365 = vpop.xlane.xlu0 %364
        %v366 = vrcp.pop 32.0
        %v367 = vmul.f32 %v272, %v366
        %v368 = vmul.f32 %v275, %v366
        %v369 = vmul.f32 %v278, %v366
        %v370 = vmul.f32 %v281, %v366
        %v371 = vmul.f32 %v284, %v366
        %v372 = vmul.f32 %v287, %v366
        %v373 = vmul.f32 %v290, %v366
        %v374 = vmul.f32 %v293, %v366
        %v375 = vmul.f32 %v296, %v366
        %v376 = vmul.f32 %v299, %v366
        %v377 = vmul.f32 %v302, %v366
        %v378 = vmul.f32 %v305, %v366
        %v379 = vmul.f32 %v308, %v366
        %v380 = vmul.f32 %v311, %v366
        %v381 = vmul.f32 %v314, %v366
        %v382 = vmul.f32 %v317, %v366
        %v383 = vmul.f32 %v320, %v366
        %v384 = vmul.f32 %v323, %v366
        %v385 = vmul.f32 %v326, %v366
        %v386 = vmul.f32 %v329, %v366
        %v387 = vmul.f32 %v332, %v366
        %v388 = vmul.f32 %v335, %v366
        %v389 = vmul.f32 %v338, %v366
        %v390 = vmul.f32 %v341, %v366
        %v391 = vmul.f32 %v344, %v366
        %v392 = vmul.f32 %v347, %v366
        %v393 = vmul.f32 %v350, %v366
        %v394 = vmul.f32 %v353, %v366
        %v395 = vmul.f32 %v356, %v366
        %v396 = vmul.f32 %v359, %v366
        %v397 = vmul.f32 %v362, %v366
        %v398 = vmul.f32 %v365, %v366
        %v399 = vsub.f32 %v237, %v367
        %v400 = vsub.f32 %v238, %v368
        %v401 = vsub.f32 %v239, %v369
        %v402 = vsub.f32 %v240, %v370
        %v403 = vsub.f32 %v241, %v371
        %v404 = vsub.f32 %v242, %v372
        %v405 = vsub.f32 %v243, %v373
        %v406 = vsub.f32 %v244, %v374
        %v407 = vsub.f32 %v245, %v375
        %v408 = vsub.f32 %v246, %v376
        %v409 = vsub.f32 %v247, %v377
        %v410 = vsub.f32 %v248, %v378
        %v411 = vsub.f32 %v249, %v379
        %v412 = vsub.f32 %v250, %v380
        %v413 = vsub.f32 %v251, %v381
        %v414 = vsub.f32 %v252, %v382
        %v415 = vsub.f32 %v253, %v383
        %v416 = vsub.f32 %v254, %v384
        %v417 = vsub.f32 %v255, %v385
        %v418 = vsub.f32 %v256, %v386
        %v419 = vsub.f32 %v257, %v387
        %v420 = vsub.f32 %v258, %v388
        %v421 = vsub.f32 %v259, %v389
        %v422 = vsub.f32 %v260, %v390
        %v423 = vsub.f32 %v261, %v391
        %v424 = vsub.f32 %v262, %v392
        %v425 = vsub.f32 %v263, %v393
        %v426 = vsub.f32 %v264, %v394
        %v427 = vsub.f32 %v265, %v395
        %v428 = vsub.f32 %v266, %v396
        %v429 = vsub.f32 %v267, %v397
        %v430 = vsub.f32 %v268, %v398
        %v431 = vmul.f32 %v399, %v399
        %v432 = vmul.f32 %v400, %v400
        %v433 = vmul.f32 %v401, %v401
        %v434 = vmul.f32 %v402, %v402
        %v435 = vmul.f32 %v403, %v403
        %v436 = vmul.f32 %v404, %v404
        %v437 = vmul.f32 %v405, %v405
        %v438 = vmul.f32 %v406, %v406
        %v439 = vmul.f32 %v407, %v407
        %v440 = vmul.f32 %v408, %v408
        %v441 = vmul.f32 %v409, %v409
        %v442 = vmul.f32 %v410, %v410
        %v443 = vmul.f32 %v411, %v411
        %v444 = vmul.f32 %v412, %v412
        %v445 = vmul.f32 %v413, %v413
        %v446 = vmul.f32 %v414, %v414
        %v447 = vmul.f32 %v415, %v415
        %v448 = vmul.f32 %v416, %v416
        %v449 = vmul.f32 %v417, %v417
        %v450 = vmul.f32 %v418, %v418
        %v451 = vmul.f32 %v419, %v419
        %v452 = vmul.f32 %v420, %v420
        %v453 = vmul.f32 %v421, %v421
        %v454 = vmul.f32 %v422, %v422
        %v455 = vmul.f32 %v423, %v423
        %v456 = vmul.f32 %v424, %v424
        %v457 = vmul.f32 %v425, %v425
        %v458 = vmul.f32 %v426, %v426
        %v459 = vmul.f32 %v427, %v427
        %v460 = vmul.f32 %v428, %v428
        %v461 = vmul.f32 %v429, %v429
        %v462 = vmul.f32 %v430, %v430
        %v463 = vsel %vm269, %v431, 0.0
        %464 = vadd.xlane.f32.xlu0 %v463
        %v465 = vpop.xlane.xlu0 %464
        %v466 = vsel %vm269, %v432, 0.0
        %467 = vadd.xlane.f32.xlu0 %v466
        %v468 = vpop.xlane.xlu0 %467
        %v469 = vsel %vm269, %v433, 0.0
        %470 = vadd.xlane.f32.xlu0 %v469
        %v471 = vpop.xlane.xlu0 %470
        %v472 = vsel %vm269, %v434, 0.0
        %473 = vadd.xlane.f32.xlu0 %v472
        %v474 = vpop.xlane.xlu0 %473
        %v475 = vsel %vm269, %v435, 0.0
        %476 = vadd.xlane.f32.xlu0 %v475
        %v477 = vpop.xlane.xlu0 %476
        %v478 = vsel %vm269, %v436, 0.0
        %479 = vadd.xlane.f32.xlu0 %v478
        %v480 = vpop.xlane.xlu0 %479
        %v481 = vsel %vm269, %v437, 0.0
        %482 = vadd.xlane.f32.xlu0 %v481
        %v483 = vpop.xlane.xlu0 %482
        %v484 = vsel %vm269, %v438, 0.0
        %485 = vadd.xlane.f32.xlu0 %v484
        %v486 = vpop.xlane.xlu0 %485
        %v487 = vsel %vm269, %v439, 0.0
        %488 = vadd.xlane.f32.xlu0 %v487
        %v489 = vpop.xlane.xlu0 %488
        %v490 = vsel %vm269, %v440, 0.0
        %491 = vadd.xlane.f32.xlu0 %v490
        %v492 = vpop.xlane.xlu0 %491
        %v493 = vsel %vm269, %v441, 0.0
        %494 = vadd.xlane.f32.xlu0 %v493
        %v495 = vpop.xlane.xlu0 %494
        %v496 = vsel %vm269, %v442, 0.0
        %497 = vadd.xlane.f32.xlu0 %v496
        %v498 = vpop.xlane.xlu0 %497
        %v499 = vsel %vm269, %v443, 0.0
        %500 = vadd.xlane.f32.xlu0 %v499
        %v501 = vpop.xlane.xlu0 %500
        %v502 = vsel %vm269, %v444, 0.0
        %503 = vadd.xlane.f32.xlu0 %v502
        %v504 = vpop.xlane.xlu0 %503
        %v505 = vsel %vm269, %v445, 0.0
        %506 = vadd.xlane.f32.xlu0 %v505
        %v507 = vpop.xlane.xlu0 %506
        %v508 = vsel %vm269, %v446, 0.0
        %509 = vadd.xlane.f32.xlu0 %v508
        %v510 = vpop.xlane.xlu0 %509
        %v511 = vsel %vm269, %v447, 0.0
        %512 = vadd.xlane.f32.xlu0 %v511
        %v513 = vpop.xlane.xlu0 %512
        %v514 = vsel %vm269, %v448, 0.0
        %515 = vadd.xlane.f32.xlu0 %v514
        %v516 = vpop.xlane.xlu0 %515
        %v517 = vsel %vm269, %v449, 0.0
        %518 = vadd.xlane.f32.xlu0 %v517
        %v519 = vpop.xlane.xlu0 %518
        %v520 = vsel %vm269, %v450, 0.0
        %521 = vadd.xlane.f32.xlu0 %v520
        %v522 = vpop.xlane.xlu0 %521
        %v523 = vsel %vm269, %v451, 0.0
        %524 = vadd.xlane.f32.xlu0 %v523
        %v525 = vpop.xlane.xlu0 %524
        %v526 = vsel %vm269, %v452, 0.0
        %527 = vadd.xlane.f32.xlu0 %v526
        %v528 = vpop.xlane.xlu0 %527
        %v529 = vsel %vm269, %v453, 0.0
        %530 = vadd.xlane.f32.xlu0 %v529
        %v531 = vpop.xlane.xlu0 %530
        %v532 = vsel %vm269, %v454, 0.0
        %533 = vadd.xlane.f32.xlu0 %v532
        %v534 = vpop.xlane.xlu0 %533
        %v535 = vsel %vm269, %v455, 0.0
        %536 = vadd.xlane.f32.xlu0 %v535
        %v537 = vpop.xlane.xlu0 %536
        %v538 = vsel %vm269, %v456, 0.0
        %539 = vadd.xlane.f32.xlu0 %v538
        %v540 = vpop.xlane.xlu0 %539
        %v541 = vsel %vm269, %v457, 0.0
        %542 = vadd.xlane.f32.xlu0 %v541
        %v543 = vpop.xlane.xlu0 %542
        %v544 = vsel %vm269, %v458, 0.0
        %545 = vadd.xlane.f32.xlu0 %v544
        %v546 = vpop.xlane.xlu0 %545
        %v547 = vsel %vm269, %v459, 0.0
        %548 = vadd.xlane.f32.xlu0 %v547
        %v549 = vpop.xlane.xlu0 %548
        %v550 = vsel %vm269, %v460, 0.0
        %551 = vadd.xlane.f32.xlu0 %v550
        %v552 = vpop.xlane.xlu0 %551
        %v553 = vsel %vm269, %v461, 0.0
        %554 = vadd.xlane.f32.xlu0 %v553
        %v555 = vpop.xlane.xlu0 %554
        %v556 = vsel %vm269, %v462, 0.0
        %557 = vadd.xlane.f32.xlu0 %v556
        %v558 = vpop.xlane.xlu0 %557
        %v559 = vmul.f32 %v465, %v366
        %v560 = vmul.f32 %v468, %v366
        %v561 = vmul.f32 %v471, %v366
        %v562 = vmul.f32 %v474, %v366
        %v563 = vmul.f32 %v477, %v366
        %v564 = vmul.f32 %v480, %v366
        %v565 = vmul.f32 %v483, %v366
        %v566 = vmul.f32 %v486, %v366
        %v567 = vmul.f32 %v489, %v366
        %v568 = vmul.f32 %v492, %v366
        %v569 = vmul.f32 %v495, %v366
        %v570 = vmul.f32 %v498, %v366
        %v571 = vmul.f32 %v501, %v366
        %v572 = vmul.f32 %v504, %v366
        %v573 = vmul.f32 %v507, %v366
        %v574 = vmul.f32 %v510, %v366
        %v575 = vmul.f32 %v513, %v366
        %v576 = vmul.f32 %v516, %v366
        %v577 = vmul.f32 %v519, %v366
        %v578 = vmul.f32 %v522, %v366
        %v579 = vmul.f32 %v525, %v366
        %v580 = vmul.f32 %v528, %v366
        %v581 = vmul.f32 %v531, %v366
        %v582 = vmul.f32 %v534, %v366
        %v583 = vmul.f32 %v537, %v366
        %v584 = vmul.f32 %v540, %v366
        %v585 = vmul.f32 %v543, %v366
        %v586 = vmul.f32 %v546, %v366
        %v587 = vmul.f32 %v549, %v366
        %v588 = vmul.f32 %v552, %v366
        %v589 = vmul.f32 %v555, %v366
        %v590 = vmul.f32 %v558, %v366
        %v591 = vadd.f32 %v559, 1e-05
        %v592 = vadd.f32 %v560, 1e-05
        %v593 = vadd.f32 %v561, 1e-05
        %v594 = vadd.f32 %v562, 1e-05
        %v595 = vadd.f32 %v563, 1e-05
        %v596 = vadd.f32 %v564, 1e-05
        %v597 = vadd.f32 %v565, 1e-05
        %v598 = vadd.f32 %v566, 1e-05
        %v599 = vadd.f32 %v567, 1e-05
        %v600 = vadd.f32 %v568, 1e-05
        %v601 = vadd.f32 %v569, 1e-05
        %v602 = vadd.f32 %v570, 1e-05
        %v603 = vadd.f32 %v571, 1e-05
        %v604 = vadd.f32 %v572, 1e-05
        %v605 = vadd.f32 %v573, 1e-05
        %v606 = vadd.f32 %v574, 1e-05
        %v607 = vadd.f32 %v575, 1e-05
        %v608 = vadd.f32 %v576, 1e-05
        %v609 = vadd.f32 %v577, 1e-05
        %v610 = vadd.f32 %v578, 1e-05
        %v611 = vadd.f32 %v579, 1e-05
        %v612 = vadd.f32 %v580, 1e-05
        %v613 = vadd.f32 %v581, 1e-05
        %v614 = vadd.f32 %v582, 1e-05
        %v615 = vadd.f32 %v583, 1e-05
        %v616 = vadd.f32 %v584, 1e-05
        %v617 = vadd.f32 %v585, 1e-05
        %v618 = vadd.f32 %v586, 1e-05
        %v619 = vadd.f32 %v587, 1e-05
        %v620 = vadd.f32 %v588, 1e-05
        %v621 = vadd.f32 %v589, 1e-05
        %v622 = vadd.f32 %v590, 1e-05
        %v623 = vrsqrt.pop %v591
        %v624 = vrsqrt.pop %v592
        %v625 = vrsqrt.pop %v593
        %v626 = vrsqrt.pop %v594
        %v627 = vrsqrt.pop %v595
        %v628 = vrsqrt.pop %v596
        %v629 = vrsqrt.pop %v597
        %v630 = vrsqrt.pop %v598
        %v631 = vrsqrt.pop %v599
        %v632 = vrsqrt.pop %v600
        %v633 = vrsqrt.pop %v601
        %v634 = vrsqrt.pop %v602
        %v635 = vrsqrt.pop %v603
        %v636 = vrsqrt.pop %v604
        %v637 = vrsqrt.pop %v605
        %v638 = vrsqrt.pop %v606
        %v639 = vrsqrt.pop %v607
        %v640 = vrsqrt.pop %v608
        %v641 = vrsqrt.pop %v609
        %v642 = vrsqrt.pop %v610
        %v643 = vrsqrt.pop %v611
        %v644 = vrsqrt.pop %v612
        %v645 = vrsqrt.pop %v613
        %v646 = vrsqrt.pop %v614
        %v647 = vrsqrt.pop %v615
        %v648 = vrsqrt.pop %v616
        %v649 = vrsqrt.pop %v617
        %v650 = vrsqrt.pop %v618
        %v651 = vrsqrt.pop %v619
        %v652 = vrsqrt.pop %v620
        %v653 = vrsqrt.pop %v621
        %v654 = vrsqrt.pop %v622
        %v655 = vmul.f32 %v399, %v623
        %v656 = vmul.f32 %v400, %v624
        %v657 = vmul.f32 %v401, %v625
        %v658 = vmul.f32 %v402, %v626
        %v659 = vmul.f32 %v403, %v627
        %v660 = vmul.f32 %v404, %v628
        %v661 = vmul.f32 %v405, %v629
        %v662 = vmul.f32 %v406, %v630
        %v663 = vmul.f32 %v407, %v631
        %v664 = vmul.f32 %v408, %v632
        %v665 = vmul.f32 %v409, %v633
        %v666 = vmul.f32 %v410, %v634
        %v667 = vmul.f32 %v411, %v635
        %v668 = vmul.f32 %v412, %v636
        %v669 = vmul.f32 %v413, %v637
        %v670 = vmul.f32 %v414, %v638
        %v671 = vmul.f32 %v415, %v639
        %v672 = vmul.f32 %v416, %v640
        %v673 = vmul.f32 %v417, %v641
        %v674 = vmul.f32 %v418, %v642
        %v675 = vmul.f32 %v419, %v643
        %v676 = vmul.f32 %v420, %v644
        %v677 = vmul.f32 %v421, %v645
        %v678 = vmul.f32 %v422, %v646
        %v679 = vmul.f32 %v423, %v647
        %v680 = vmul.f32 %v424, %v648
        %v681 = vmul.f32 %v425, %v649
        %v682 = vmul.f32 %v426, %v650
        %v683 = vmul.f32 %v427, %v651
        %v684 = vmul.f32 %v428, %v652
        %v685 = vmul.f32 %v429, %v653
        %v686 = vmul.f32 %v430, %v654
        %v687 = vld [vmem:[%s1] sm:$0x1]
        %v689 = vlaneseq
        %v690 = vshrl.u32 %v689, 7
        %v691 = vsub.s32 0, %v690
        %v692 = vrot.slane %v687, %v691
        %v694 = vmul.f32 %v655, %v692
        %v695 = vmul.f32 %v656, %v692
        %v696 = vmul.f32 %v657, %v692
        %v697 = vmul.f32 %v658, %v692
        %v698 = vmul.f32 %v659, %v692
        %v699 = vmul.f32 %v660, %v692
        %v700 = vmul.f32 %v661, %v692
        %v701 = vmul.f32 %v662, %v692
        %v702 = vmul.f32 %v663, %v692
        %v703 = vmul.f32 %v664, %v692
        %v704 = vmul.f32 %v665, %v692
        %v705 = vmul.f32 %v666, %v692
        %v706 = vmul.f32 %v667, %v692
        %v707 = vmul.f32 %v668, %v692
        %v708 = vmul.f32 %v669, %v692
        %v709 = vmul.f32 %v670, %v692
        %v710 = vmul.f32 %v671, %v692
        %v711 = vmul.f32 %v672, %v692
        %v712 = vmul.f32 %v673, %v692
        %v713 = vmul.f32 %v674, %v692
        %v714 = vmul.f32 %v675, %v692
        %v715 = vmul.f32 %v676, %v692
        %v716 = vmul.f32 %v677, %v692
        %v717 = vmul.f32 %v678, %v692
        %v718 = vmul.f32 %v679, %v692
        %v719 = vmul.f32 %v680, %v692
        %v720 = vmul.f32 %v681, %v692
        %v721 = vmul.f32 %v682, %v692
        %v722 = vmul.f32 %v683, %v692
        %v723 = vmul.f32 %v684, %v692
        %v724 = vmul.f32 %v685, %v692
        %v725 = vmul.f32 %v686, %v692
        %v726 = vld [vmem:[%s2] sm:$0x1]
        %v728 = vlaneseq
        %v729 = vshrl.u32 %v728, 7
        %v730 = vsub.s32 0, %v729
        %v731 = vrot.slane %v726, %v730
        %v733 = vadd.f32 %v694, %v731
        %v734 = vadd.f32 %v695, %v731
        %v735 = vadd.f32 %v696, %v731
        %v736 = vadd.f32 %v697, %v731
        %v737 = vadd.f32 %v698, %v731
        %v738 = vadd.f32 %v699, %v731
        %v739 = vadd.f32 %v700, %v731
        %v740 = vadd.f32 %v701, %v731
        %v741 = vadd.f32 %v702, %v731
        %v742 = vadd.f32 %v703, %v731
        %v743 = vadd.f32 %v704, %v731
        %v744 = vadd.f32 %v705, %v731
        %v745 = vadd.f32 %v706, %v731
        %v746 = vadd.f32 %v707, %v731
        %v747 = vadd.f32 %v708, %v731
        %v748 = vadd.f32 %v709, %v731
        %v749 = vadd.f32 %v710, %v731
        %v750 = vadd.f32 %v711, %v731
        %v751 = vadd.f32 %v712, %v731
        %v752 = vadd.f32 %v713, %v731
        %v753 = vadd.f32 %v714, %v731
        %v754 = vadd.f32 %v715, %v731
        %v755 = vadd.f32 %v716, %v731
        %v756 = vadd.f32 %v717, %v731
        %v757 = vadd.f32 %v718, %v731
        %v758 = vadd.f32 %v719, %v731
        %v759 = vadd.f32 %v720, %v731
        %v760 = vadd.f32 %v721, %v731
        %v761 = vadd.f32 %v722, %v731
        %v762 = vadd.f32 %v723, %v731
        %v763 = vadd.f32 %v724, %v731
        %v764 = vadd.f32 %v725, %v731
        %v765 = vld [vmem:[%s3] sm:$0x1]
        %v766 = vlaneseq
        %v767 = vshrl.u32 %v766, 7
        %v768 = vsub.s32 0, %v767
        %v769 = vrot.slane %v765, %v768
        %v770 = vmul.f32 %v733, %v769
        %v771 = vmul.f32 %v734, %v769
        %v772 = vmul.f32 %v735, %v769
        %v773 = vmul.f32 %v736, %v769
        %v774 = vmul.f32 %v737, %v769
        %v775 = vmul.f32 %v738, %v769
        %v776 = vmul.f32 %v739, %v769
        %v777 = vmul.f32 %v740, %v769
        %v778 = vmul.f32 %v741, %v769
        %v779 = vmul.f32 %v742, %v769
        %v780 = vmul.f32 %v743, %v769
        %v781 = vmul.f32 %v744, %v769
        %v782 = vmul.f32 %v745, %v769
        %v783 = vmul.f32 %v746, %v769
        %v784 = vmul.f32 %v747, %v769
        %v785 = vmul.f32 %v748, %v769
        %v786 = vmul.f32 %v749, %v769
        %v787 = vmul.f32 %v750, %v769
        %v788 = vmul.f32 %v751, %v769
        %v789 = vmul.f32 %v752, %v769
        %v790 = vmul.f32 %v753, %v769
        %v791 = vmul.f32 %v754, %v769
        %v792 = vmul.f32 %v755, %v769
        %v793 = vmul.f32 %v756, %v769
        %v794 = vmul.f32 %v757, %v769
        %v795 = vmul.f32 %v758, %v769
        %v796 = vmul.f32 %v759, %v769
        %v797 = vmul.f32 %v760, %v769
        %v798 = vmul.f32 %v761, %v769
        %v799 = vmul.f32 %v762, %v769
        %v800 = vmul.f32 %v763, %v769
        %v801 = vmul.f32 %v764, %v769
        %v802 = vsel %vm269, %v770, 0.0
        %803 = vadd.xlane.f32.xlu0 %v802
        %v804 = vpop.xlane.xlu0 %803
        %v805 = vsel %vm269, %v771, 0.0
        %806 = vadd.xlane.f32.xlu0 %v805
        %v807 = vpop.xlane.xlu0 %806
        %v808 = vsel %vm269, %v772, 0.0
        %809 = vadd.xlane.f32.xlu0 %v808
        %v810 = vpop.xlane.xlu0 %809
        %v811 = vsel %vm269, %v773, 0.0
        %812 = vadd.xlane.f32.xlu0 %v811
        %v813 = vpop.xlane.xlu0 %812
        %v814 = vsel %vm269, %v774, 0.0
        %815 = vadd.xlane.f32.xlu0 %v814
        %v816 = vpop.xlane.xlu0 %815
        %v817 = vsel %vm269, %v775, 0.0
        %818 = vadd.xlane.f32.xlu0 %v817
        %v819 = vpop.xlane.xlu0 %818
        %v820 = vsel %vm269, %v776, 0.0
        %821 = vadd.xlane.f32.xlu0 %v820
        %v822 = vpop.xlane.xlu0 %821
        %v823 = vsel %vm269, %v777, 0.0
        %824 = vadd.xlane.f32.xlu0 %v823
        %v825 = vpop.xlane.xlu0 %824
        %v826 = vsel %vm269, %v778, 0.0
        %827 = vadd.xlane.f32.xlu0 %v826
        %v828 = vpop.xlane.xlu0 %827
        %v829 = vsel %vm269, %v779, 0.0
        %830 = vadd.xlane.f32.xlu0 %v829
        %v831 = vpop.xlane.xlu0 %830
        %v832 = vsel %vm269, %v780, 0.0
        %833 = vadd.xlane.f32.xlu0 %v832
        %v834 = vpop.xlane.xlu0 %833
        %v835 = vsel %vm269, %v781, 0.0
        %836 = vadd.xlane.f32.xlu0 %v835
        %v837 = vpop.xlane.xlu0 %836
        %v838 = vsel %vm269, %v782, 0.0
        %839 = vadd.xlane.f32.xlu0 %v838
        %v840 = vpop.xlane.xlu0 %839
        %v841 = vsel %vm269, %v783, 0.0
        %842 = vadd.xlane.f32.xlu0 %v841
        %v843 = vpop.xlane.xlu0 %842
        %v844 = vsel %vm269, %v784, 0.0
        %845 = vadd.xlane.f32.xlu0 %v844
        %v846 = vpop.xlane.xlu0 %845
        %v847 = vsel %vm269, %v785, 0.0
        %848 = vadd.xlane.f32.xlu0 %v847
        %v849 = vpop.xlane.xlu0 %848
        %v850 = vsel %vm269, %v786, 0.0
        %851 = vadd.xlane.f32.xlu0 %v850
        %v852 = vpop.xlane.xlu0 %851
        %v853 = vsel %vm269, %v787, 0.0
        %854 = vadd.xlane.f32.xlu0 %v853
        %v855 = vpop.xlane.xlu0 %854
        %v856 = vsel %vm269, %v788, 0.0
        %857 = vadd.xlane.f32.xlu0 %v856
        %v858 = vpop.xlane.xlu0 %857
        %v859 = vsel %vm269, %v789, 0.0
        %860 = vadd.xlane.f32.xlu0 %v859
        %v861 = vpop.xlane.xlu0 %860
        %v862 = vsel %vm269, %v790, 0.0
        %863 = vadd.xlane.f32.xlu0 %v862
        %v864 = vpop.xlane.xlu0 %863
        %v865 = vsel %vm269, %v791, 0.0
        %866 = vadd.xlane.f32.xlu0 %v865
        %v867 = vpop.xlane.xlu0 %866
        %v868 = vsel %vm269, %v792, 0.0
        %869 = vadd.xlane.f32.xlu0 %v868
        %v870 = vpop.xlane.xlu0 %869
        %v871 = vsel %vm269, %v793, 0.0
        %872 = vadd.xlane.f32.xlu0 %v871
        %v873 = vpop.xlane.xlu0 %872
        %v874 = vsel %vm269, %v794, 0.0
        %875 = vadd.xlane.f32.xlu0 %v874
        %v876 = vpop.xlane.xlu0 %875
        %v877 = vsel %vm269, %v795, 0.0
        %878 = vadd.xlane.f32.xlu0 %v877
        %v879 = vpop.xlane.xlu0 %878
        %v880 = vsel %vm269, %v796, 0.0
        %881 = vadd.xlane.f32.xlu0 %v880
        %v882 = vpop.xlane.xlu0 %881
        %v883 = vsel %vm269, %v797, 0.0
        %884 = vadd.xlane.f32.xlu0 %v883
        %v885 = vpop.xlane.xlu0 %884
        %v886 = vsel %vm269, %v798, 0.0
        %887 = vadd.xlane.f32.xlu0 %v886
        %v888 = vpop.xlane.xlu0 %887
        %v889 = vsel %vm269, %v799, 0.0
        %890 = vadd.xlane.f32.xlu0 %v889
        %v891 = vpop.xlane.xlu0 %890
        %v892 = vsel %vm269, %v800, 0.0
        %893 = vadd.xlane.f32.xlu0 %v892
        %v894 = vpop.xlane.xlu0 %893
        %v895 = vsel %vm269, %v801, 0.0
        %896 = vadd.xlane.f32.xlu0 %v895
        %v897 = vpop.xlane.xlu0 %896
        %v930 = vlaneseq
        %v931 = vand.u32 %v930, 127
        %v932 = vlaneseq
        %v933 = vshrl.u32 %v932, 7
        %v934 = vsub.s32 %v931, %v933
        %v935 = vrot.slane %v804, %v934
        %v936 = vadd.s32 %v931, 4294967288
        %v937 = vlaneseq
        %v938 = vshrl.u32 %v937, 7
        %v939 = vsub.s32 %v936, %v938
        %v940 = vrot.slane %v807, %v939
        %vm941 = vcmask 130112
        %v942 = vsel %vm941, %v940, %v935
        %v943 = vlaneseq
        %v944 = vshrl.u32 %v943, 7
        %v945 = vsub.s32 %v931, %v944
        %v946 = vrot.slane %v810, %v945
        %v947 = vlaneseq
        %v948 = vshrl.u32 %v947, 7
        %v949 = vsub.s32 %v936, %v948
        %v950 = vrot.slane %v813, %v949
        %v951 = vsel %vm941, %v950, %v946
        %v952 = vlaneseq
        %v953 = vshrl.u32 %v952, 7
        %v954 = vsub.s32 %v931, %v953
        %v955 = vrot.slane %v816, %v954
        %v956 = vlaneseq
        %v957 = vshrl.u32 %v956, 7
        %v958 = vsub.s32 %v936, %v957
        %v959 = vrot.slane %v819, %v958
        %v960 = vsel %vm941, %v959, %v955
        %v961 = vlaneseq
        %v962 = vshrl.u32 %v961, 7
        %v963 = vsub.s32 %v931, %v962
        %v964 = vrot.slane %v822, %v963
        %v965 = vlaneseq
        %v966 = vshrl.u32 %v965, 7
        %v967 = vsub.s32 %v936, %v966
        %v968 = vrot.slane %v825, %v967
        %v969 = vsel %vm941, %v968, %v964
        %v970 = vlaneseq
        %v971 = vshrl.u32 %v970, 7
        %v972 = vsub.s32 %v931, %v971
        %v973 = vrot.slane %v828, %v972
        %v974 = vlaneseq
        %v975 = vshrl.u32 %v974, 7
        %v976 = vsub.s32 %v936, %v975
        %v977 = vrot.slane %v831, %v976
        %v978 = vsel %vm941, %v977, %v973
        %v979 = vlaneseq
        %v980 = vshrl.u32 %v979, 7
        %v981 = vsub.s32 %v931, %v980
        %v982 = vrot.slane %v834, %v981
        %v983 = vlaneseq
        %v984 = vshrl.u32 %v983, 7
        %v985 = vsub.s32 %v936, %v984
        %v986 = vrot.slane %v837, %v985
        %v987 = vsel %vm941, %v986, %v982
        %v988 = vlaneseq
        %v989 = vshrl.u32 %v988, 7
        %v990 = vsub.s32 %v931, %v989
        %v991 = vrot.slane %v840, %v990
        %v992 = vlaneseq
        %v993 = vshrl.u32 %v992, 7
        %v994 = vsub.s32 %v936, %v993
        %v995 = vrot.slane %v843, %v994
        %v996 = vsel %vm941, %v995, %v991
        %v997 = vlaneseq
        %v998 = vshrl.u32 %v997, 7
        %v999 = vsub.s32 %v931, %v998
        %v1000 = vrot.slane %v846, %v999
        %v1001 = vlaneseq
        %v1002 = vshrl.u32 %v1001, 7
        %v1003 = vsub.s32 %v936, %v1002
        %v1004 = vrot.slane %v849, %v1003
        %v1005 = vsel %vm941, %v1004, %v1000
        %v1006 = vlaneseq
        %v1007 = vshrl.u32 %v1006, 7
        %v1008 = vsub.s32 %v931, %v1007
        %v1009 = vrot.slane %v852, %v1008
        %v1010 = vlaneseq
        %v1011 = vshrl.u32 %v1010, 7
        %v1012 = vsub.s32 %v936, %v1011
        %v1013 = vrot.slane %v855, %v1012
        %v1014 = vsel %vm941, %v1013, %v1009
        %v1015 = vlaneseq
        %v1016 = vshrl.u32 %v1015, 7
        %v1017 = vsub.s32 %v931, %v1016
        %v1018 = vrot.slane %v858, %v1017
        %v1019 = vlaneseq
        %v1020 = vshrl.u32 %v1019, 7
        %v1021 = vsub.s32 %v936, %v1020
        %v1022 = vrot.slane %v861, %v1021
        %v1023 = vsel %vm941, %v1022, %v1018
        %v1024 = vlaneseq
        %v1025 = vshrl.u32 %v1024, 7
        %v1026 = vsub.s32 %v931, %v1025
        %v1027 = vrot.slane %v864, %v1026
        %v1028 = vlaneseq
        %v1029 = vshrl.u32 %v1028, 7
        %v1030 = vsub.s32 %v936, %v1029
        %v1031 = vrot.slane %v867, %v1030
        %v1032 = vsel %vm941, %v1031, %v1027
        %v1033 = vlaneseq
        %v1034 = vshrl.u32 %v1033, 7
        %v1035 = vsub.s32 %v931, %v1034
        %v1036 = vrot.slane %v870, %v1035
        %v1037 = vlaneseq
        %v1038 = vshrl.u32 %v1037, 7
        %v1039 = vsub.s32 %v936, %v1038
        %v1040 = vrot.slane %v873, %v1039
        %v1041 = vsel %vm941, %v1040, %v1036
        %v1042 = vlaneseq
        %v1043 = vshrl.u32 %v1042, 7
        %v1044 = vsub.s32 %v931, %v1043
        %v1045 = vrot.slane %v876, %v1044
        %v1046 = vlaneseq
        %v1047 = vshrl.u32 %v1046, 7
        %v1048 = vsub.s32 %v936, %v1047
        %v1049 = vrot.slane %v879, %v1048
        %v1050 = vsel %vm941, %v1049, %v1045
        %v1051 = vlaneseq
        %v1052 = vshrl.u32 %v1051, 7
        %v1053 = vsub.s32 %v931, %v1052
        %v1054 = vrot.slane %v882, %v1053
        %v1055 = vlaneseq
        %v1056 = vshrl.u32 %v1055, 7
        %v1057 = vsub.s32 %v936, %v1056
        %v1058 = vrot.slane %v885, %v1057
        %v1059 = vsel %vm941, %v1058, %v1054
        %v1060 = vlaneseq
        %v1061 = vshrl.u32 %v1060, 7
        %v1062 = vsub.s32 %v931, %v1061
        %v1063 = vrot.slane %v888, %v1062
        %v1064 = vlaneseq
        %v1065 = vshrl.u32 %v1064, 7
        %v1066 = vsub.s32 %v936, %v1065
        %v1067 = vrot.slane %v891, %v1066
        %v1068 = vsel %vm941, %v1067, %v1063
        %v1069 = vlaneseq
        %v1070 = vshrl.u32 %v1069, 7
        %v1071 = vsub.s32 %v931, %v1070
        %v1072 = vrot.slane %v894, %v1071
        %v1073 = vlaneseq
        %v1074 = vshrl.u32 %v1073, 7
        %v1075 = vsub.s32 %v936, %v1074
        %v1076 = vrot.slane %v897, %v1075
        %v1077 = vsel %vm941, %v1076, %v1072
        %vm1078 = vcmask 1041409
        %v1079 = vsel %vm1078, %v951, %v942
        %vm1080 = vcmask 1042434
        %v1081 = vsel %vm1080, %v960, %v1079
        %vm1082 = vcmask 1043459
        %v1083 = vsel %vm1082, %v969, %v1081
        %vm1084 = vcmask 1044484
        %v1085 = vsel %vm1084, %v978, %v1083
        %vm1086 = vcmask 1045509
        %v1087 = vsel %vm1086, %v987, %v1085
        %vm1088 = vcmask 1046534
        %v1089 = vsel %vm1088, %v996, %v1087
        %vm1090 = vcmask 1047559
        %v1091 = vsel %vm1090, %v1005, %v1089
        %v1092 = vsel %vm1078, %v1023, %v1014
        %v1093 = vsel %vm1080, %v1032, %v1092
        %v1094 = vsel %vm1082, %v1041, %v1093
        %v1095 = vsel %vm1084, %v1050, %v1094
        %v1096 = vsel %vm1086, %v1059, %v1095
        %v1097 = vsel %vm1088, %v1068, %v1096
        %v1098 = vsel %vm1090, %v1077, %v1097
        %vm1101 = vcmask 130048
        %1102 = vst.msk [vmem:[%s234] sm:$0xff] %vm1101, %v1091
        %1103 = vst.msk [vmem:[%s234 + $0x8] sm:$0xff] %vm1101, %v1098
        %v1104 = vld [vmem:[%s3 + $0x1] sm:$0x1]
        %v1105 = vlaneseq
        %v1106 = vshrl.u32 %v1105, 7
        %v1107 = vsub.s32 0, %v1106
        %v1108 = vrot.slane %v1104, %v1107
        %v1109 = vmul.f32 %v733, %v1108
        %v1110 = vmul.f32 %v734, %v1108
        %v1111 = vmul.f32 %v735, %v1108
        %v1112 = vmul.f32 %v736, %v1108
        %v1113 = vmul.f32 %v737, %v1108
        %v1114 = vmul.f32 %v738, %v1108
        %v1115 = vmul.f32 %v739, %v1108
        %v1116 = vmul.f32 %v740, %v1108
        %v1117 = vmul.f32 %v741, %v1108
        %v1118 = vmul.f32 %v742, %v1108
        %v1119 = vmul.f32 %v743, %v1108
        %v1120 = vmul.f32 %v744, %v1108
        %v1121 = vmul.f32 %v745, %v1108
        %v1122 = vmul.f32 %v746, %v1108
        %v1123 = vmul.f32 %v747, %v1108
        %v1124 = vmul.f32 %v748, %v1108
        %v1125 = vmul.f32 %v749, %v1108
        %v1126 = vmul.f32 %v750, %v1108
        %v1127 = vmul.f32 %v751, %v1108
        %v1128 = vmul.f32 %v752, %v1108
        %v1129 = vmul.f32 %v753, %v1108
        %v1130 = vmul.f32 %v754, %v1108
        %v1131 = vmul.f32 %v755, %v1108
        %v1132 = vmul.f32 %v756, %v1108
        %v1133 = vmul.f32 %v757, %v1108
        %v1134 = vmul.f32 %v758, %v1108
        %v1135 = vmul.f32 %v759, %v1108
        %v1136 = vmul.f32 %v760, %v1108
        %v1137 = vmul.f32 %v761, %v1108
        %v1138 = vmul.f32 %v762, %v1108
        %v1139 = vmul.f32 %v763, %v1108
        %v1140 = vmul.f32 %v764, %v1108
        %v1141 = vsel %vm269, %v1109, 0.0
        %1142 = vadd.xlane.f32.xlu0 %v1141
        %v1143 = vpop.xlane.xlu0 %1142
        %v1144 = vsel %vm269, %v1110, 0.0
        %1145 = vadd.xlane.f32.xlu0 %v1144
        %v1146 = vpop.xlane.xlu0 %1145
        %v1147 = vsel %vm269, %v1111, 0.0
        %1148 = vadd.xlane.f32.xlu0 %v1147
        %v1149 = vpop.xlane.xlu0 %1148
        %v1150 = vsel %vm269, %v1112, 0.0
        %1151 = vadd.xlane.f32.xlu0 %v1150
        %v1152 = vpop.xlane.xlu0 %1151
        %v1153 = vsel %vm269, %v1113, 0.0
        %1154 = vadd.xlane.f32.xlu0 %v1153
        %v1155 = vpop.xlane.xlu0 %1154
        %v1156 = vsel %vm269, %v1114, 0.0
        %1157 = vadd.xlane.f32.xlu0 %v1156
        %v1158 = vpop.xlane.xlu0 %1157
        %v1159 = vsel %vm269, %v1115, 0.0
        %1160 = vadd.xlane.f32.xlu0 %v1159
        %v1161 = vpop.xlane.xlu0 %1160
        %v1162 = vsel %vm269, %v1116, 0.0
        %1163 = vadd.xlane.f32.xlu0 %v1162
        %v1164 = vpop.xlane.xlu0 %1163
        %v1165 = vsel %vm269, %v1117, 0.0
        %1166 = vadd.xlane.f32.xlu0 %v1165
        %v1167 = vpop.xlane.xlu0 %1166
        %v1168 = vsel %vm269, %v1118, 0.0
        %1169 = vadd.xlane.f32.xlu0 %v1168
        %v1170 = vpop.xlane.xlu0 %1169
        %v1171 = vsel %vm269, %v1119, 0.0
        %1172 = vadd.xlane.f32.xlu0 %v1171
        %v1173 = vpop.xlane.xlu0 %1172
        %v1174 = vsel %vm269, %v1120, 0.0
        %1175 = vadd.xlane.f32.xlu0 %v1174
        %v1176 = vpop.xlane.xlu0 %1175
        %v1177 = vsel %vm269, %v1121, 0.0
        %1178 = vadd.xlane.f32.xlu0 %v1177
        %v1179 = vpop.xlane.xlu0 %1178
        %v1180 = vsel %vm269, %v1122, 0.0
        %1181 = vadd.xlane.f32.xlu0 %v1180
        %v1182 = vpop.xlane.xlu0 %1181
        %v1183 = vsel %vm269, %v1123, 0.0
        %1184 = vadd.xlane.f32.xlu0 %v1183
        %v1185 = vpop.xlane.xlu0 %1184
        %v1186 = vsel %vm269, %v1124, 0.0
        %1187 = vadd.xlane.f32.xlu0 %v1186
        %v1188 = vpop.xlane.xlu0 %1187
        %v1189 = vsel %vm269, %v1125, 0.0
        %1190 = vadd.xlane.f32.xlu0 %v1189
        %v1191 = vpop.xlane.xlu0 %1190
        %v1192 = vsel %vm269, %v1126, 0.0
        %1193 = vadd.xlane.f32.xlu0 %v1192
        %v1194 = vpop.xlane.xlu0 %1193
        %v1195 = vsel %vm269, %v1127, 0.0
        %1196 = vadd.xlane.f32.xlu0 %v1195
        %v1197 = vpop.xlane.xlu0 %1196
        %v1198 = vsel %vm269, %v1128, 0.0
        %1199 = vadd.xlane.f32.xlu0 %v1198
        %v1200 = vpop.xlane.xlu0 %1199
        %v1201 = vsel %vm269, %v1129, 0.0
        %1202 = vadd.xlane.f32.xlu0 %v1201
        %v1203 = vpop.xlane.xlu0 %1202
        %v1204 = vsel %vm269, %v1130, 0.0
        %1205 = vadd.xlane.f32.xlu0 %v1204
        %v1206 = vpop.xlane.xlu0 %1205
        %v1207 = vsel %vm269, %v1131, 0.0
        %1208 = vadd.xlane.f32.xlu0 %v1207
        %v1209 = vpop.xlane.xlu0 %1208
        %v1210 = vsel %vm269, %v1132, 0.0
        %1211 = vadd.xlane.f32.xlu0 %v1210
        %v1212 = vpop.xlane.xlu0 %1211
        %v1213 = vsel %vm269, %v1133, 0.0
        %1214 = vadd.xlane.f32.xlu0 %v1213
        %v1215 = vpop.xlane.xlu0 %1214
        %v1216 = vsel %vm269, %v1134, 0.0
        %1217 = vadd.xlane.f32.xlu0 %v1216
        %v1218 = vpop.xlane.xlu0 %1217
        %v1219 = vsel %vm269, %v1135, 0.0
        %1220 = vadd.xlane.f32.xlu0 %v1219
        %v1221 = vpop.xlane.xlu0 %1220
        %v1222 = vsel %vm269, %v1136, 0.0
        %1223 = vadd.xlane.f32.xlu0 %v1222
        %v1224 = vpop.xlane.xlu0 %1223
        %v1225 = vsel %vm269, %v1137, 0.0
        %1226 = vadd.xlane.f32.xlu0 %v1225
        %v1227 = vpop.xlane.xlu0 %1226
        %v1228 = vsel %vm269, %v1138, 0.0
        %1229 = vadd.xlane.f32.xlu0 %v1228
        %v1230 = vpop.xlane.xlu0 %1229
        %v1231 = vsel %vm269, %v1139, 0.0
        %1232 = vadd.xlane.f32.xlu0 %v1231
        %v1233 = vpop.xlane.xlu0 %1232
        %v1234 = vsel %vm269, %v1140, 0.0
        %1235 = vadd.xlane.f32.xlu0 %v1234
        %v1236 = vpop.xlane.xlu0 %1235
        %v1269 = vlaneseq
        %v1270 = vshrl.u32 %v1269, 7
        %v1271 = vsub.s32 %v931, %v1270
        %v1272 = vrot.slane %v1143, %v1271
        %v1273 = vlaneseq
        %v1274 = vshrl.u32 %v1273, 7
        %v1275 = vsub.s32 %v936, %v1274
        %v1276 = vrot.slane %v1146, %v1275
        %v1277 = vsel %vm941, %v1276, %v1272
        %v1278 = vlaneseq
        %v1279 = vshrl.u32 %v1278, 7
        %v1280 = vsub.s32 %v931, %v1279
        %v1281 = vrot.slane %v1149, %v1280
        %v1282 = vlaneseq
        %v1283 = vshrl.u32 %v1282, 7
        %v1284 = vsub.s32 %v936, %v1283
        %v1285 = vrot.slane %v1152, %v1284
        %v1286 = vsel %vm941, %v1285, %v1281
        %v1287 = vlaneseq
        %v1288 = vshrl.u32 %v1287, 7
        %v1289 = vsub.s32 %v931, %v1288
        %v1290 = vrot.slane %v1155, %v1289
        %v1291 = vlaneseq
        %v1292 = vshrl.u32 %v1291, 7
        %v1293 = vsub.s32 %v936, %v1292
        %v1294 = vrot.slane %v1158, %v1293
        %v1295 = vsel %vm941, %v1294, %v1290
        %v1296 = vlaneseq
        %v1297 = vshrl.u32 %v1296, 7
        %v1298 = vsub.s32 %v931, %v1297
        %v1299 = vrot.slane %v1161, %v1298
        %v1300 = vlaneseq
        %v1301 = vshrl.u32 %v1300, 7
        %v1302 = vsub.s32 %v936, %v1301
        %v1303 = vrot.slane %v1164, %v1302
        %v1304 = vsel %vm941, %v1303, %v1299
        %v1305 = vlaneseq
        %v1306 = vshrl.u32 %v1305, 7
        %v1307 = vsub.s32 %v931, %v1306
        %v1308 = vrot.slane %v1167, %v1307
        %v1309 = vlaneseq
        %v1310 = vshrl.u32 %v1309, 7
        %v1311 = vsub.s32 %v936, %v1310
        %v1312 = vrot.slane %v1170, %v1311
        %v1313 = vsel %vm941, %v1312, %v1308
        %v1314 = vlaneseq
        %v1315 = vshrl.u32 %v1314, 7
        %v1316 = vsub.s32 %v931, %v1315
        %v1317 = vrot.slane %v1173, %v1316
        %v1318 = vlaneseq
        %v1319 = vshrl.u32 %v1318, 7
        %v1320 = vsub.s32 %v936, %v1319
        %v1321 = vrot.slane %v1176, %v1320
        %v1322 = vsel %vm941, %v1321, %v1317
        %v1323 = vlaneseq
        %v1324 = vshrl.u32 %v1323, 7
        %v1325 = vsub.s32 %v931, %v1324
        %v1326 = vrot.slane %v1179, %v1325
        %v1327 = vlaneseq
        %v1328 = vshrl.u32 %v1327, 7
        %v1329 = vsub.s32 %v936, %v1328
        %v1330 = vrot.slane %v1182, %v1329
        %v1331 = vsel %vm941, %v1330, %v1326
        %v1332 = vlaneseq
        %v1333 = vshrl.u32 %v1332, 7
        %v1334 = vsub.s32 %v931, %v1333
        %v1335 = vrot.slane %v1185, %v1334
        %v1336 = vlaneseq
        %v1337 = vshrl.u32 %v1336, 7
        %v1338 = vsub.s32 %v936, %v1337
        %v1339 = vrot.slane %v1188, %v1338
        %v1340 = vsel %vm941, %v1339, %v1335
        %v1341 = vlaneseq
        %v1342 = vshrl.u32 %v1341, 7
        %v1343 = vsub.s32 %v931, %v1342
        %v1344 = vrot.slane %v1191, %v1343
        %v1345 = vlaneseq
        %v1346 = vshrl.u32 %v1345, 7
        %v1347 = vsub.s32 %v936, %v1346
        %v1348 = vrot.slane %v1194, %v1347
        %v1349 = vsel %vm941, %v1348, %v1344
        %v1350 = vlaneseq
        %v1351 = vshrl.u32 %v1350, 7
        %v1352 = vsub.s32 %v931, %v1351
        %v1353 = vrot.slane %v1197, %v1352
        %v1354 = vlaneseq
        %v1355 = vshrl.u32 %v1354, 7
        %v1356 = vsub.s32 %v936, %v1355
        %v1357 = vrot.slane %v1200, %v1356
        %v1358 = vsel %vm941, %v1357, %v1353
        %v1359 = vlaneseq
        %v1360 = vshrl.u32 %v1359, 7
        %v1361 = vsub.s32 %v931, %v1360
        %v1362 = vrot.slane %v1203, %v1361
        %v1363 = vlaneseq
        %v1364 = vshrl.u32 %v1363, 7
        %v1365 = vsub.s32 %v936, %v1364
        %v1366 = vrot.slane %v1206, %v1365
        %v1367 = vsel %vm941, %v1366, %v1362
        %v1368 = vlaneseq
        %v1369 = vshrl.u32 %v1368, 7
        %v1370 = vsub.s32 %v931, %v1369
        %v1371 = vrot.slane %v1209, %v1370
        %v1372 = vlaneseq
        %v1373 = vshrl.u32 %v1372, 7
        %v1374 = vsub.s32 %v936, %v1373
        %v1375 = vrot.slane %v1212, %v1374
        %v1376 = vsel %vm941, %v1375, %v1371
        %v1377 = vlaneseq
        %v1378 = vshrl.u32 %v1377, 7
        %v1379 = vsub.s32 %v931, %v1378
        %v1380 = vrot.slane %v1215, %v1379
        %v1381 = vlaneseq
        %v1382 = vshrl.u32 %v1381, 7
        %v1383 = vsub.s32 %v936, %v1382
        %v1384 = vrot.slane %v1218, %v1383
        %v1385 = vsel %vm941, %v1384, %v1380
        %v1386 = vlaneseq
        %v1387 = vshrl.u32 %v1386, 7
        %v1388 = vsub.s32 %v931, %v1387
        %v1389 = vrot.slane %v1221, %v1388
        %v1390 = vlaneseq
        %v1391 = vshrl.u32 %v1390, 7
        %v1392 = vsub.s32 %v936, %v1391
        %v1393 = vrot.slane %v1224, %v1392
        %v1394 = vsel %vm941, %v1393, %v1389
        %v1395 = vlaneseq
        %v1396 = vshrl.u32 %v1395, 7
        %v1397 = vsub.s32 %v931, %v1396
        %v1398 = vrot.slane %v1227, %v1397
        %v1399 = vlaneseq
        %v1400 = vshrl.u32 %v1399, 7
        %v1401 = vsub.s32 %v936, %v1400
        %v1402 = vrot.slane %v1230, %v1401
        %v1403 = vsel %vm941, %v1402, %v1398
        %v1404 = vlaneseq
        %v1405 = vshrl.u32 %v1404, 7
        %v1406 = vsub.s32 %v931, %v1405
        %v1407 = vrot.slane %v1233, %v1406
        %v1408 = vlaneseq
        %v1409 = vshrl.u32 %v1408, 7
        %v1410 = vsub.s32 %v936, %v1409
        %v1411 = vrot.slane %v1236, %v1410
        %v1412 = vsel %vm941, %v1411, %v1407
        %v1413 = vsel %vm1078, %v1286, %v1277
        %v1414 = vsel %vm1080, %v1295, %v1413
        %v1415 = vsel %vm1082, %v1304, %v1414
        %v1416 = vsel %vm1084, %v1313, %v1415
        %v1417 = vsel %vm1086, %v1322, %v1416
        %v1418 = vsel %vm1088, %v1331, %v1417
        %v1419 = vsel %vm1090, %v1340, %v1418
        %v1420 = vsel %vm1078, %v1358, %v1349
        %v1421 = vsel %vm1080, %v1367, %v1420
        %v1422 = vsel %vm1082, %v1376, %v1421
        %v1423 = vsel %vm1084, %v1385, %v1422
        %v1424 = vsel %vm1086, %v1394, %v1423
        %v1425 = vsel %vm1088, %v1403, %v1424
        %v1426 = vsel %vm1090, %v1412, %v1425
        %s1429 = scalar_lea.vmem %s234, 16 [#allocation5]
        %1430 = vst.msk [vmem:[%s1429] sm:$0xff] %vm1101, %v1419
        %1431 = vst.msk [vmem:[%s1429 + $0x8] sm:$0xff] %vm1101, %v1426
        %v1432 = vld [vmem:[%s3 + $0x2] sm:$0x1]
        %v1433 = vlaneseq
        %v1434 = vshrl.u32 %v1433, 7
        %v1435 = vsub.s32 0, %v1434
        %v1436 = vrot.slane %v1432, %v1435
        %v1437 = vmul.f32 %v733, %v1436
        %v1438 = vmul.f32 %v734, %v1436
        %v1439 = vmul.f32 %v735, %v1436
        %v1440 = vmul.f32 %v736, %v1436
        %v1441 = vmul.f32 %v737, %v1436
        %v1442 = vmul.f32 %v738, %v1436
        %v1443 = vmul.f32 %v739, %v1436
        %v1444 = vmul.f32 %v740, %v1436
        %v1445 = vmul.f32 %v741, %v1436
        %v1446 = vmul.f32 %v742, %v1436
        %v1447 = vmul.f32 %v743, %v1436
        %v1448 = vmul.f32 %v744, %v1436
        %v1449 = vmul.f32 %v745, %v1436
        %v1450 = vmul.f32 %v746, %v1436
        %v1451 = vmul.f32 %v747, %v1436
        %v1452 = vmul.f32 %v748, %v1436
        %v1453 = vmul.f32 %v749, %v1436
        %v1454 = vmul.f32 %v750, %v1436
        %v1455 = vmul.f32 %v751, %v1436
        %v1456 = vmul.f32 %v752, %v1436
        %v1457 = vmul.f32 %v753, %v1436
        %v1458 = vmul.f32 %v754, %v1436
        %v1459 = vmul.f32 %v755, %v1436
        %v1460 = vmul.f32 %v756, %v1436
        %v1461 = vmul.f32 %v757, %v1436
        %v1462 = vmul.f32 %v758, %v1436
        %v1463 = vmul.f32 %v759, %v1436
        %v1464 = vmul.f32 %v760, %v1436
        %v1465 = vmul.f32 %v761, %v1436
        %v1466 = vmul.f32 %v762, %v1436
        %v1467 = vmul.f32 %v763, %v1436
        %v1468 = vmul.f32 %v764, %v1436
        %v1469 = vsel %vm269, %v1437, 0.0
        %1470 = vadd.xlane.f32.xlu0 %v1469
        %v1471 = vpop.xlane.xlu0 %1470
        %v1472 = vsel %vm269, %v1438, 0.0
        %1473 = vadd.xlane.f32.xlu0 %v1472
        %v1474 = vpop.xlane.xlu0 %1473
        %v1475 = vsel %vm269, %v1439, 0.0
        %1476 = vadd.xlane.f32.xlu0 %v1475
        %v1477 = vpop.xlane.xlu0 %1476
        %v1478 = vsel %vm269, %v1440, 0.0
        %1479 = vadd.xlane.f32.xlu0 %v1478
        %v1480 = vpop.xlane.xlu0 %1479
        %v1481 = vsel %vm269, %v1441, 0.0
        %1482 = vadd.xlane.f32.xlu0 %v1481
        %v1483 = vpop.xlane.xlu0 %1482
        %v1484 = vsel %vm269, %v1442, 0.0
        %1485 = vadd.xlane.f32.xlu0 %v1484
        %v1486 = vpop.xlane.xlu0 %1485
        %v1487 = vsel %vm269, %v1443, 0.0
        %1488 = vadd.xlane.f32.xlu0 %v1487
        %v1489 = vpop.xlane.xlu0 %1488
        %v1490 = vsel %vm269, %v1444, 0.0
        %1491 = vadd.xlane.f32.xlu0 %v1490
        %v1492 = vpop.xlane.xlu0 %1491
        %v1493 = vsel %vm269, %v1445, 0.0
        %1494 = vadd.xlane.f32.xlu0 %v1493
        %v1495 = vpop.xlane.xlu0 %1494
        %v1496 = vsel %vm269, %v1446, 0.0
        %1497 = vadd.xlane.f32.xlu0 %v1496
        %v1498 = vpop.xlane.xlu0 %1497
        %v1499 = vsel %vm269, %v1447, 0.0
        %1500 = vadd.xlane.f32.xlu0 %v1499
        %v1501 = vpop.xlane.xlu0 %1500
        %v1502 = vsel %vm269, %v1448, 0.0
        %1503 = vadd.xlane.f32.xlu0 %v1502
        %v1504 = vpop.xlane.xlu0 %1503
        %v1505 = vsel %vm269, %v1449, 0.0
        %1506 = vadd.xlane.f32.xlu0 %v1505
        %v1507 = vpop.xlane.xlu0 %1506
        %v1508 = vsel %vm269, %v1450, 0.0
        %1509 = vadd.xlane.f32.xlu0 %v1508
        %v1510 = vpop.xlane.xlu0 %1509
        %v1511 = vsel %vm269, %v1451, 0.0
        %1512 = vadd.xlane.f32.xlu0 %v1511
        %v1513 = vpop.xlane.xlu0 %1512
        %v1514 = vsel %vm269, %v1452, 0.0
        %1515 = vadd.xlane.f32.xlu0 %v1514
        %v1516 = vpop.xlane.xlu0 %1515
        %v1517 = vsel %vm269, %v1453, 0.0
        %1518 = vadd.xlane.f32.xlu0 %v1517
        %v1519 = vpop.xlane.xlu0 %1518
        %v1520 = vsel %vm269, %v1454, 0.0
        %1521 = vadd.xlane.f32.xlu0 %v1520
        %v1522 = vpop.xlane.xlu0 %1521
        %v1523 = vsel %vm269, %v1455, 0.0
        %1524 = vadd.xlane.f32.xlu0 %v1523
        %v1525 = vpop.xlane.xlu0 %1524
        %v1526 = vsel %vm269, %v1456, 0.0
        %1527 = vadd.xlane.f32.xlu0 %v1526
        %v1528 = vpop.xlane.xlu0 %1527
        %v1529 = vsel %vm269, %v1457, 0.0
        %1530 = vadd.xlane.f32.xlu0 %v1529
        %v1531 = vpop.xlane.xlu0 %1530
        %v1532 = vsel %vm269, %v1458, 0.0
        %1533 = vadd.xlane.f32.xlu0 %v1532
        %v1534 = vpop.xlane.xlu0 %1533
        %v1535 = vsel %vm269, %v1459, 0.0
        %1536 = vadd.xlane.f32.xlu0 %v1535
        %v1537 = vpop.xlane.xlu0 %1536
        %v1538 = vsel %vm269, %v1460, 0.0
        %1539 = vadd.xlane.f32.xlu0 %v1538
        %v1540 = vpop.xlane.xlu0 %1539
        %v1541 = vsel %vm269, %v1461, 0.0
        %1542 = vadd.xlane.f32.xlu0 %v1541
        %v1543 = vpop.xlane.xlu0 %1542
        %v1544 = vsel %vm269, %v1462, 0.0
        %1545 = vadd.xlane.f32.xlu0 %v1544
        %v1546 = vpop.xlane.xlu0 %1545
        %v1547 = vsel %vm269, %v1463, 0.0
        %1548 = vadd.xlane.f32.xlu0 %v1547
        %v1549 = vpop.xlane.xlu0 %1548
        %v1550 = vsel %vm269, %v1464, 0.0
        %1551 = vadd.xlane.f32.xlu0 %v1550
        %v1552 = vpop.xlane.xlu0 %1551
        %v1553 = vsel %vm269, %v1465, 0.0
        %1554 = vadd.xlane.f32.xlu0 %v1553
        %v1555 = vpop.xlane.xlu0 %1554
        %v1556 = vsel %vm269, %v1466, 0.0
        %1557 = vadd.xlane.f32.xlu0 %v1556
        %v1558 = vpop.xlane.xlu0 %1557
        %v1559 = vsel %vm269, %v1467, 0.0
        %1560 = vadd.xlane.f32.xlu0 %v1559
        %v1561 = vpop.xlane.xlu0 %1560
        %v1562 = vsel %vm269, %v1468, 0.0
        %1563 = vadd.xlane.f32.xlu0 %v1562
        %v1564 = vpop.xlane.xlu0 %1563
        %v1597 = vlaneseq
        %v1598 = vshrl.u32 %v1597, 7
        %v1599 = vsub.s32 %v931, %v1598
        %v1600 = vrot.slane %v1471, %v1599
        %v1601 = vlaneseq
        %v1602 = vshrl.u32 %v1601, 7
        %v1603 = vsub.s32 %v936, %v1602
        %v1604 = vrot.slane %v1474, %v1603
        %v1605 = vsel %vm941, %v1604, %v1600
        %v1606 = vlaneseq
        %v1607 = vshrl.u32 %v1606, 7
        %v1608 = vsub.s32 %v931, %v1607
        %v1609 = vrot.slane %v1477, %v1608
        %v1610 = vlaneseq
        %v1611 = vshrl.u32 %v1610, 7
        %v1612 = vsub.s32 %v936, %v1611
        %v1613 = vrot.slane %v1480, %v1612
        %v1614 = vsel %vm941, %v1613, %v1609
        %v1615 = vlaneseq
        %v1616 = vshrl.u32 %v1615, 7
        %v1617 = vsub.s32 %v931, %v1616
        %v1618 = vrot.slane %v1483, %v1617
        %v1619 = vlaneseq
        %v1620 = vshrl.u32 %v1619, 7
        %v1621 = vsub.s32 %v936, %v1620
        %v1622 = vrot.slane %v1486, %v1621
        %v1623 = vsel %vm941, %v1622, %v1618
        %v1624 = vlaneseq
        %v1625 = vshrl.u32 %v1624, 7
        %v1626 = vsub.s32 %v931, %v1625
        %v1627 = vrot.slane %v1489, %v1626
        %v1628 = vlaneseq
        %v1629 = vshrl.u32 %v1628, 7
        %v1630 = vsub.s32 %v936, %v1629
        %v1631 = vrot.slane %v1492, %v1630
        %v1632 = vsel %vm941, %v1631, %v1627
        %v1633 = vlaneseq
        %v1634 = vshrl.u32 %v1633, 7
        %v1635 = vsub.s32 %v931, %v1634
        %v1636 = vrot.slane %v1495, %v1635
        %v1637 = vlaneseq
        %v1638 = vshrl.u32 %v1637, 7
        %v1639 = vsub.s32 %v936, %v1638
        %v1640 = vrot.slane %v1498, %v1639
        %v1641 = vsel %vm941, %v1640, %v1636
        %v1642 = vlaneseq
        %v1643 = vshrl.u32 %v1642, 7
        %v1644 = vsub.s32 %v931, %v1643
        %v1645 = vrot.slane %v1501, %v1644
        %v1646 = vlaneseq
        %v1647 = vshrl.u32 %v1646, 7
        %v1648 = vsub.s32 %v936, %v1647
        %v1649 = vrot.slane %v1504, %v1648
        %v1650 = vsel %vm941, %v1649, %v1645
        %v1651 = vlaneseq
        %v1652 = vshrl.u32 %v1651, 7
        %v1653 = vsub.s32 %v931, %v1652
        %v1654 = vrot.slane %v1507, %v1653
        %v1655 = vlaneseq
        %v1656 = vshrl.u32 %v1655, 7
        %v1657 = vsub.s32 %v936, %v1656
        %v1658 = vrot.slane %v1510, %v1657
        %v1659 = vsel %vm941, %v1658, %v1654
        %v1660 = vlaneseq
        %v1661 = vshrl.u32 %v1660, 7
        %v1662 = vsub.s32 %v931, %v1661
        %v1663 = vrot.slane %v1513, %v1662
        %v1664 = vlaneseq
        %v1665 = vshrl.u32 %v1664, 7
        %v1666 = vsub.s32 %v936, %v1665
        %v1667 = vrot.slane %v1516, %v1666
        %v1668 = vsel %vm941, %v1667, %v1663
        %v1669 = vlaneseq
        %v1670 = vshrl.u32 %v1669, 7
        %v1671 = vsub.s32 %v931, %v1670
        %v1672 = vrot.slane %v1519, %v1671
        %v1673 = vlaneseq
        %v1674 = vshrl.u32 %v1673, 7
        %v1675 = vsub.s32 %v936, %v1674
        %v1676 = vrot.slane %v1522, %v1675
        %v1677 = vsel %vm941, %v1676, %v1672
        %v1678 = vlaneseq
        %v1679 = vshrl.u32 %v1678, 7
        %v1680 = vsub.s32 %v931, %v1679
        %v1681 = vrot.slane %v1525, %v1680
        %v1682 = vlaneseq
        %v1683 = vshrl.u32 %v1682, 7
        %v1684 = vsub.s32 %v936, %v1683
        %v1685 = vrot.slane %v1528, %v1684
        %v1686 = vsel %vm941, %v1685, %v1681
        %v1687 = vlaneseq
        %v1688 = vshrl.u32 %v1687, 7
        %v1689 = vsub.s32 %v931, %v1688
        %v1690 = vrot.slane %v1531, %v1689
        %v1691 = vlaneseq
        %v1692 = vshrl.u32 %v1691, 7
        %v1693 = vsub.s32 %v936, %v1692
        %v1694 = vrot.slane %v1534, %v1693
        %v1695 = vsel %vm941, %v1694, %v1690
        %v1696 = vlaneseq
        %v1697 = vshrl.u32 %v1696, 7
        %v1698 = vsub.s32 %v931, %v1697
        %v1699 = vrot.slane %v1537, %v1698
        %v1700 = vlaneseq
        %v1701 = vshrl.u32 %v1700, 7
        %v1702 = vsub.s32 %v936, %v1701
        %v1703 = vrot.slane %v1540, %v1702
        %v1704 = vsel %vm941, %v1703, %v1699
        %v1705 = vlaneseq
        %v1706 = vshrl.u32 %v1705, 7
        %v1707 = vsub.s32 %v931, %v1706
        %v1708 = vrot.slane %v1543, %v1707
        %v1709 = vlaneseq
        %v1710 = vshrl.u32 %v1709, 7
        %v1711 = vsub.s32 %v936, %v1710
        %v1712 = vrot.slane %v1546, %v1711
        %v1713 = vsel %vm941, %v1712, %v1708
        %v1714 = vlaneseq
        %v1715 = vshrl.u32 %v1714, 7
        %v1716 = vsub.s32 %v931, %v1715
        %v1717 = vrot.slane %v1549, %v1716
        %v1718 = vlaneseq
        %v1719 = vshrl.u32 %v1718, 7
        %v1720 = vsub.s32 %v936, %v1719
        %v1721 = vrot.slane %v1552, %v1720
        %v1722 = vsel %vm941, %v1721, %v1717
        %v1723 = vlaneseq
        %v1724 = vshrl.u32 %v1723, 7
        %v1725 = vsub.s32 %v931, %v1724
        %v1726 = vrot.slane %v1555, %v1725
        %v1727 = vlaneseq
        %v1728 = vshrl.u32 %v1727, 7
        %v1729 = vsub.s32 %v936, %v1728
        %v1730 = vrot.slane %v1558, %v1729
        %v1731 = vsel %vm941, %v1730, %v1726
        %v1732 = vlaneseq
        %v1733 = vshrl.u32 %v1732, 7
        %v1734 = vsub.s32 %v931, %v1733
        %v1735 = vrot.slane %v1561, %v1734
        %v1736 = vlaneseq
        %v1737 = vshrl.u32 %v1736, 7
        %v1738 = vsub.s32 %v936, %v1737
        %v1739 = vrot.slane %v1564, %v1738
        %v1740 = vsel %vm941, %v1739, %v1735
        %v1741 = vsel %vm1078, %v1614, %v1605
        %v1742 = vsel %vm1080, %v1623, %v1741
        %v1743 = vsel %vm1082, %v1632, %v1742
        %v1744 = vsel %vm1084, %v1641, %v1743
        %v1745 = vsel %vm1086, %v1650, %v1744
        %v1746 = vsel %vm1088, %v1659, %v1745
        %v1747 = vsel %vm1090, %v1668, %v1746
        %v1748 = vsel %vm1078, %v1686, %v1677
        %v1749 = vsel %vm1080, %v1695, %v1748
        %v1750 = vsel %vm1082, %v1704, %v1749
        %v1751 = vsel %vm1084, %v1713, %v1750
        %v1752 = vsel %vm1086, %v1722, %v1751
        %v1753 = vsel %vm1088, %v1731, %v1752
        %v1754 = vsel %vm1090, %v1740, %v1753
        %s1757 = scalar_lea.vmem %s234, 32 [#allocation5]
        %1758 = vst.msk [vmem:[%s1757] sm:$0xff] %vm1101, %v1747
        %1759 = vst.msk [vmem:[%s1757 + $0x8] sm:$0xff] %vm1101, %v1754
        %v1760 = vld [vmem:[%s3 + $0x3] sm:$0x1]
        %v1761 = vlaneseq
        %v1762 = vshrl.u32 %v1761, 7
        %v1763 = vsub.s32 0, %v1762
        %v1764 = vrot.slane %v1760, %v1763
        %v1765 = vmul.f32 %v733, %v1764
        %v1766 = vmul.f32 %v734, %v1764
        %v1767 = vmul.f32 %v735, %v1764
        %v1768 = vmul.f32 %v736, %v1764
        %v1769 = vmul.f32 %v737, %v1764
        %v1770 = vmul.f32 %v738, %v1764
        %v1771 = vmul.f32 %v739, %v1764
        %v1772 = vmul.f32 %v740, %v1764
        %v1773 = vmul.f32 %v741, %v1764
        %v1774 = vmul.f32 %v742, %v1764
        %v1775 = vmul.f32 %v743, %v1764
        %v1776 = vmul.f32 %v744, %v1764
        %v1777 = vmul.f32 %v745, %v1764
        %v1778 = vmul.f32 %v746, %v1764
        %v1779 = vmul.f32 %v747, %v1764
        %v1780 = vmul.f32 %v748, %v1764
        %v1781 = vmul.f32 %v749, %v1764
        %v1782 = vmul.f32 %v750, %v1764
        %v1783 = vmul.f32 %v751, %v1764
        %v1784 = vmul.f32 %v752, %v1764
        %v1785 = vmul.f32 %v753, %v1764
        %v1786 = vmul.f32 %v754, %v1764
        %v1787 = vmul.f32 %v755, %v1764
        %v1788 = vmul.f32 %v756, %v1764
        %v1789 = vmul.f32 %v757, %v1764
        %v1790 = vmul.f32 %v758, %v1764
        %v1791 = vmul.f32 %v759, %v1764
        %v1792 = vmul.f32 %v760, %v1764
        %v1793 = vmul.f32 %v761, %v1764
        %v1794 = vmul.f32 %v762, %v1764
        %v1795 = vmul.f32 %v763, %v1764
        %v1796 = vmul.f32 %v764, %v1764
        %v1797 = vsel %vm269, %v1765, 0.0
        %1798 = vadd.xlane.f32.xlu0 %v1797
        %v1799 = vpop.xlane.xlu0 %1798
        %v1800 = vsel %vm269, %v1766, 0.0
        %1801 = vadd.xlane.f32.xlu0 %v1800
        %v1802 = vpop.xlane.xlu0 %1801
        %v1803 = vsel %vm269, %v1767, 0.0
        %1804 = vadd.xlane.f32.xlu0 %v1803
        %v1805 = vpop.xlane.xlu0 %1804
        %v1806 = vsel %vm269, %v1768, 0.0
        %1807 = vadd.xlane.f32.xlu0 %v1806
        %v1808 = vpop.xlane.xlu0 %1807
        %v1809 = vsel %vm269, %v1769, 0.0
        %1810 = vadd.xlane.f32.xlu0 %v1809
        %v1811 = vpop.xlane.xlu0 %1810
        %v1812 = vsel %vm269, %v1770, 0.0
        %1813 = vadd.xlane.f32.xlu0 %v1812
        %v1814 = vpop.xlane.xlu0 %1813
        %v1815 = vsel %vm269, %v1771, 0.0
        %1816 = vadd.xlane.f32.xlu0 %v1815
        %v1817 = vpop.xlane.xlu0 %1816
        %v1818 = vsel %vm269, %v1772, 0.0
        %1819 = vadd.xlane.f32.xlu0 %v1818
        %v1820 = vpop.xlane.xlu0 %1819
        %v1821 = vsel %vm269, %v1773, 0.0
        %1822 = vadd.xlane.f32.xlu0 %v1821
        %v1823 = vpop.xlane.xlu0 %1822
        %v1824 = vsel %vm269, %v1774, 0.0
        %1825 = vadd.xlane.f32.xlu0 %v1824
        %v1826 = vpop.xlane.xlu0 %1825
        %v1827 = vsel %vm269, %v1775, 0.0
        %1828 = vadd.xlane.f32.xlu0 %v1827
        %v1829 = vpop.xlane.xlu0 %1828
        %v1830 = vsel %vm269, %v1776, 0.0
        %1831 = vadd.xlane.f32.xlu0 %v1830
        %v1832 = vpop.xlane.xlu0 %1831
        %v1833 = vsel %vm269, %v1777, 0.0
        %1834 = vadd.xlane.f32.xlu0 %v1833
        %v1835 = vpop.xlane.xlu0 %1834
        %v1836 = vsel %vm269, %v1778, 0.0
        %1837 = vadd.xlane.f32.xlu0 %v1836
        %v1838 = vpop.xlane.xlu0 %1837
        %v1839 = vsel %vm269, %v1779, 0.0
        %1840 = vadd.xlane.f32.xlu0 %v1839
        %v1841 = vpop.xlane.xlu0 %1840
        %v1842 = vsel %vm269, %v1780, 0.0
        %1843 = vadd.xlane.f32.xlu0 %v1842
        %v1844 = vpop.xlane.xlu0 %1843
        %v1845 = vsel %vm269, %v1781, 0.0
        %1846 = vadd.xlane.f32.xlu0 %v1845
        %v1847 = vpop.xlane.xlu0 %1846
        %v1848 = vsel %vm269, %v1782, 0.0
        %1849 = vadd.xlane.f32.xlu0 %v1848
        %v1850 = vpop.xlane.xlu0 %1849
        %v1851 = vsel %vm269, %v1783, 0.0
        %1852 = vadd.xlane.f32.xlu0 %v1851
        %v1853 = vpop.xlane.xlu0 %1852
        %v1854 = vsel %vm269, %v1784, 0.0
        %1855 = vadd.xlane.f32.xlu0 %v1854
        %v1856 = vpop.xlane.xlu0 %1855
        %v1857 = vsel %vm269, %v1785, 0.0
        %1858 = vadd.xlane.f32.xlu0 %v1857
        %v1859 = vpop.xlane.xlu0 %1858
        %v1860 = vsel %vm269, %v1786, 0.0
        %1861 = vadd.xlane.f32.xlu0 %v1860
        %v1862 = vpop.xlane.xlu0 %1861
        %v1863 = vsel %vm269, %v1787, 0.0
        %1864 = vadd.xlane.f32.xlu0 %v1863
        %v1865 = vpop.xlane.xlu0 %1864
        %v1866 = vsel %vm269, %v1788, 0.0
        %1867 = vadd.xlane.f32.xlu0 %v1866
        %v1868 = vpop.xlane.xlu0 %1867
        %v1869 = vsel %vm269, %v1789, 0.0
        %1870 = vadd.xlane.f32.xlu0 %v1869
        %v1871 = vpop.xlane.xlu0 %1870
        %v1872 = vsel %vm269, %v1790, 0.0
        %1873 = vadd.xlane.f32.xlu0 %v1872
        %v1874 = vpop.xlane.xlu0 %1873
        %v1875 = vsel %vm269, %v1791, 0.0
        %1876 = vadd.xlane.f32.xlu0 %v1875
        %v1877 = vpop.xlane.xlu0 %1876
        %v1878 = vsel %vm269, %v1792, 0.0
        %1879 = vadd.xlane.f32.xlu0 %v1878
        %v1880 = vpop.xlane.xlu0 %1879
        %v1881 = vsel %vm269, %v1793, 0.0
        %1882 = vadd.xlane.f32.xlu0 %v1881
        %v1883 = vpop.xlane.xlu0 %1882
        %v1884 = vsel %vm269, %v1794, 0.0
        %1885 = vadd.xlane.f32.xlu0 %v1884
        %v1886 = vpop.xlane.xlu0 %1885
        %v1887 = vsel %vm269, %v1795, 0.0
        %1888 = vadd.xlane.f32.xlu0 %v1887
        %v1889 = vpop.xlane.xlu0 %1888
        %v1890 = vsel %vm269, %v1796, 0.0
        %1891 = vadd.xlane.f32.xlu0 %v1890
        %v1892 = vpop.xlane.xlu0 %1891
        %v1925 = vlaneseq
        %v1926 = vshrl.u32 %v1925, 7
        %v1927 = vsub.s32 %v931, %v1926
        %v1928 = vrot.slane %v1799, %v1927
        %v1929 = vlaneseq
        %v1930 = vshrl.u32 %v1929, 7
        %v1931 = vsub.s32 %v936, %v1930
        %v1932 = vrot.slane %v1802, %v1931
        %v1933 = vsel %vm941, %v1932, %v1928
        %v1934 = vlaneseq
        %v1935 = vshrl.u32 %v1934, 7
        %v1936 = vsub.s32 %v931, %v1935
        %v1937 = vrot.slane %v1805, %v1936
        %v1938 = vlaneseq
        %v1939 = vshrl.u32 %v1938, 7
        %v1940 = vsub.s32 %v936, %v1939
        %v1941 = vrot.slane %v1808, %v1940
        %v1942 = vsel %vm941, %v1941, %v1937
        %v1943 = vlaneseq
        %v1944 = vshrl.u32 %v1943, 7
        %v1945 = vsub.s32 %v931, %v1944
        %v1946 = vrot.slane %v1811, %v1945
        %v1947 = vlaneseq
        %v1948 = vshrl.u32 %v1947, 7
        %v1949 = vsub.s32 %v936, %v1948
        %v1950 = vrot.slane %v1814, %v1949
        %v1951 = vsel %vm941, %v1950, %v1946
        %v1952 = vlaneseq
        %v1953 = vshrl.u32 %v1952, 7
        %v1954 = vsub.s32 %v931, %v1953
        %v1955 = vrot.slane %v1817, %v1954
        %v1956 = vlaneseq
        %v1957 = vshrl.u32 %v1956, 7
        %v1958 = vsub.s32 %v936, %v1957
        %v1959 = vrot.slane %v1820, %v1958
        %v1960 = vsel %vm941, %v1959, %v1955
        %v1961 = vlaneseq
        %v1962 = vshrl.u32 %v1961, 7
        %v1963 = vsub.s32 %v931, %v1962
        %v1964 = vrot.slane %v1823, %v1963
        %v1965 = vlaneseq
        %v1966 = vshrl.u32 %v1965, 7
        %v1967 = vsub.s32 %v936, %v1966
        %v1968 = vrot.slane %v1826, %v1967
        %v1969 = vsel %vm941, %v1968, %v1964
        %v1970 = vlaneseq
        %v1971 = vshrl.u32 %v1970, 7
        %v1972 = vsub.s32 %v931, %v1971
        %v1973 = vrot.slane %v1829, %v1972
        %v1974 = vlaneseq
        %v1975 = vshrl.u32 %v1974, 7
        %v1976 = vsub.s32 %v936, %v1975
        %v1977 = vrot.slane %v1832, %v1976
        %v1978 = vsel %vm941, %v1977, %v1973
        %v1979 = vlaneseq
        %v1980 = vshrl.u32 %v1979, 7
        %v1981 = vsub.s32 %v931, %v1980
        %v1982 = vrot.slane %v1835, %v1981
        %v1983 = vlaneseq
        %v1984 = vshrl.u32 %v1983, 7
        %v1985 = vsub.s32 %v936, %v1984
        %v1986 = vrot.slane %v1838, %v1985
        %v1987 = vsel %vm941, %v1986, %v1982
        %v1988 = vlaneseq
        %v1989 = vshrl.u32 %v1988, 7
        %v1990 = vsub.s32 %v931, %v1989
        %v1991 = vrot.slane %v1841, %v1990
        %v1992 = vlaneseq
        %v1993 = vshrl.u32 %v1992, 7
        %v1994 = vsub.s32 %v936, %v1993
        %v1995 = vrot.slane %v1844, %v1994
        %v1996 = vsel %vm941, %v1995, %v1991
        %v1997 = vlaneseq
        %v1998 = vshrl.u32 %v1997, 7
        %v1999 = vsub.s32 %v931, %v1998
        %v2000 = vrot.slane %v1847, %v1999
        %v2001 = vlaneseq
        %v2002 = vshrl.u32 %v2001, 7
        %v2003 = vsub.s32 %v936, %v2002
        %v2004 = vrot.slane %v1850, %v2003
        %v2005 = vsel %vm941, %v2004, %v2000
        %v2006 = vlaneseq
        %v2007 = vshrl.u32 %v2006, 7
        %v2008 = vsub.s32 %v931, %v2007
        %v2009 = vrot.slane %v1853, %v2008
        %v2010 = vlaneseq
        %v2011 = vshrl.u32 %v2010, 7
        %v2012 = vsub.s32 %v936, %v2011
        %v2013 = vrot.slane %v1856, %v2012
        %v2014 = vsel %vm941, %v2013, %v2009
        %v2015 = vlaneseq
        %v2016 = vshrl.u32 %v2015, 7
        %v2017 = vsub.s32 %v931, %v2016
        %v2018 = vrot.slane %v1859, %v2017
        %v2019 = vlaneseq
        %v2020 = vshrl.u32 %v2019, 7
        %v2021 = vsub.s32 %v936, %v2020
        %v2022 = vrot.slane %v1862, %v2021
        %v2023 = vsel %vm941, %v2022, %v2018
        %v2024 = vlaneseq
        %v2025 = vshrl.u32 %v2024, 7
        %v2026 = vsub.s32 %v931, %v2025
        %v2027 = vrot.slane %v1865, %v2026
        %v2028 = vlaneseq
        %v2029 = vshrl.u32 %v2028, 7
        %v2030 = vsub.s32 %v936, %v2029
        %v2031 = vrot.slane %v1868, %v2030
        %v2032 = vsel %vm941, %v2031, %v2027
        %v2033 = vlaneseq
        %v2034 = vshrl.u32 %v2033, 7
        %v2035 = vsub.s32 %v931, %v2034
        %v2036 = vrot.slane %v1871, %v2035
        %v2037 = vlaneseq
        %v2038 = vshrl.u32 %v2037, 7
        %v2039 = vsub.s32 %v936, %v2038
        %v2040 = vrot.slane %v1874, %v2039
        %v2041 = vsel %vm941, %v2040, %v2036
        %v2042 = vlaneseq
        %v2043 = vshrl.u32 %v2042, 7
        %v2044 = vsub.s32 %v931, %v2043
        %v2045 = vrot.slane %v1877, %v2044
        %v2046 = vlaneseq
        %v2047 = vshrl.u32 %v2046, 7
        %v2048 = vsub.s32 %v936, %v2047
        %v2049 = vrot.slane %v1880, %v2048
        %v2050 = vsel %vm941, %v2049, %v2045
        %v2051 = vlaneseq
        %v2052 = vshrl.u32 %v2051, 7
        %v2053 = vsub.s32 %v931, %v2052
        %v2054 = vrot.slane %v1883, %v2053
        %v2055 = vlaneseq
        %v2056 = vshrl.u32 %v2055, 7
        %v2057 = vsub.s32 %v936, %v2056
        %v2058 = vrot.slane %v1886, %v2057
        %v2059 = vsel %vm941, %v2058, %v2054
        %v2060 = vlaneseq
        %v2061 = vshrl.u32 %v2060, 7
        %v2062 = vsub.s32 %v931, %v2061
        %v2063 = vrot.slane %v1889, %v2062
        %v2064 = vlaneseq
        %v2065 = vshrl.u32 %v2064, 7
        %v2066 = vsub.s32 %v936, %v2065
        %v2067 = vrot.slane %v1892, %v2066
        %v2068 = vsel %vm941, %v2067, %v2063
        %v2069 = vsel %vm1078, %v1942, %v1933
        %v2070 = vsel %vm1080, %v1951, %v2069
        %v2071 = vsel %vm1082, %v1960, %v2070
        %v2072 = vsel %vm1084, %v1969, %v2071
        %v2073 = vsel %vm1086, %v1978, %v2072
        %v2074 = vsel %vm1088, %v1987, %v2073
        %v2075 = vsel %vm1090, %v1996, %v2074
        %v2076 = vsel %vm1078, %v2014, %v2005
        %v2077 = vsel %vm1080, %v2023, %v2076
        %v2078 = vsel %vm1082, %v2032, %v2077
        %v2079 = vsel %vm1084, %v2041, %v2078
        %v2080 = vsel %vm1086, %v2050, %v2079
        %v2081 = vsel %vm1088, %v2059, %v2080
        %v2082 = vsel %vm1090, %v2068, %v2081
        %s2085 = scalar_lea.vmem %s234, 48 [#allocation5]
        %2086 = vst.msk [vmem:[%s2085] sm:$0xff] %vm1101, %v2075
        %2087 = vst.msk [vmem:[%s2085 + $0x8] sm:$0xff] %vm1101, %v2082
        %s2088 = sand.u32 %s134, 1
        %s2089 = scalar_lea.sflag [#allocation4], %s2088
        %s2090 = sand.u32 %s134, 1
        %s2091 = smul.addr %s2090, 64
        %s2092 = scalar_lea.vmem [#allocation5], %s2091
        // Predicated region
        $region41: #{tpu_custom_call.1} parent=35 // pred_check
          %p2093 = pneg %p144
        $region42: #{tpu_custom_call.1} parent=35 // pred_check_branch
          %2095 = sbr.rel (%p2093) target = $region44
        $region43: #{tpu_custom_call.1} parent=35 // pred_region
          %s2096 = smul.u32 2, %s26
          %s2098 = ssub.s32 1024, 1024
          %2099 = vsyncadd %s2089, %s2098
          %s2100 = smul.addr %s25, 8
          %s2101 = sadd.s32 %s2096, %s2100
          %s2102 = smul.addr %s2101, 128
          %s2103 = scalar_lea.hbm %s4, %s2102
          %s2104 = sshll.u32 %s2092, 4
          %s2105 = int_to_ptr.vmem [resolvable:$true] %s2104
          %2110 = dma.vmem_to_hbm [thread:$0]  %s2105, 1024, %s2103, %s2089, 128, 128, 8
        $region44: #{tpu_custom_call.1} parent=35 // pred_fallthru
          _
      $region36: #{tpu_custom_call.1} parent=5 // pred_fallthru
        _
      %p2111 = scmp.le.s32.totalorder 2, %s16
      // Predicated region
      $region45: #{tpu_custom_call.1} parent=5 // pred_check
        %p2112 = pneg %p2111
      $region46: #{tpu_custom_call.1} parent=5 // pred_check_branch
        %2114 = sbr.rel (%p2112) target = $region48
      $region47: #{tpu_custom_call.1} parent=5 // pred_region
        %s2115 = ssub.s32 %s16, 2
        // Predicated region
        $region49: #{tpu_custom_call.1} parent=47 // pred_check
          %p2116 = pneg %p150
        $region50: #{tpu_custom_call.1} parent=47 // pred_check_branch
          %2118 = sbr.rel (%p2116) target = $region52
        $region51: #{tpu_custom_call.1} parent=47 // pred_region
          %s2119 = sand.u32 %s135, 1
          %s2120 = scalar_lea.sflag [#allocation4], %s2119
          %s2121 = sand.u32 %s135, 1
          %s2122 = smul.addr %s2121, 64
          %s2123 = scalar_lea.vmem [#allocation5], %s2122
          %2124 = dma.done %s2120, 1024
        $region52: #{tpu_custom_call.1} parent=47 // pred_fallthru
          _
      $region48: #{tpu_custom_call.1} parent=5 // pred_fallthru
        _
    $region6: #{tpu_custom_call.1} parent=1 // loop_footer
      %s20 = sadd.s32 1, %s16
    $region7: #{tpu_custom_call.1} parent=1 // loop_footer_branch
      %15 = sbr.rel target = $region3
    $region8: #{tpu_custom_call.1} parent=1 // loop_exit
      _
    %2125 = vsyncpa [#allocation3], 1
    %s2126 = scalar_lea.sflag [#allocation3], 1
    %2127 = vsyncpa %s2126, 1
    %2128 = vsyncpa [#allocation4], 1
    %s2129 = scalar_lea.sflag [#allocation4], 1
    %2130 = vsyncpa %s2129, 1

</llo_original>
